<compile_context>
chip_gen: v5e
topology: v5e:2x2
jax: 0.10.0
libtpu: 0.0.40
codegen_flags: <defaults>
</compile_context>

<pallas_src>
import functools

import jax
import jax.numpy as jnp
from jax import lax
from jax.experimental import pallas as pl
from jax.experimental.pallas import tpu as pltpu


# ------------------------------- fused kernel ------------------------------ #

def _layernorm(x, g, b, eps=1e-12):
    mu = jnp.mean(x, axis=-1, keepdims=True)
    var = jnp.mean(jnp.square(x - mu), axis=-1, keepdims=True)
    return (x - mu) * lax.rsqrt(var + eps) * g + b


def _fused_bert_kernel(
        # ----- per-batch inputs -----
        x_ref, mask_ref, extra_ref, drop_ref,
        # ----- shared embedding LN -----
        eg_ref, eb_ref,
        # ----- per-layer (streamed over the layer grid axis) -----
        wqkv_ref, bqkv_ref, wo_ref, bo_ref, l1g_ref, l1b_ref,
        win_ref, bin_ref, wout_ref, bout_ref, l2g_ref, l2b_ref,
        # ----- shared pooler + classification head -----
        pw_ref, pb_ref, w1p_ref, w1e_ref, b1_ref, w2_ref, b2_ref,
        # ----- output -----
        o_ref,
        # ----- scratch -----
        h_scr,
        *, seq, hidden, heads, head_dim, sm_scale):
    f32 = jnp.float32
    bf16 = jnp.bfloat16
    layer = pl.program_id(1)
    n_layers = pl.num_programs(1)

    # -------- embedding LayerNorm (once per batch element) -------- #
    @pl.when(layer == 0)
    def _():
        h_scr[...] = _layernorm(x_ref[0], eg_ref[...], eb_ref[...])

    h = h_scr[...]                                           # (S, H) f32
    h_b = h.astype(bf16)

    # ---------------------------- self attention ---------------------------- #
    # Fused QKV projection: one lane-dense (S, 3H) MXU pass.
    qkv = jnp.dot(h_b, wqkv_ref[0], preferred_element_type=f32) + bqkv_ref[0]
    mask = mask_ref[0]                                       # (1, S) additive

    attn = jnp.zeros((seq, hidden), f32)
    for hh in range(heads):
        q = qkv[:, hh * head_dim:(hh + 1) * head_dim]
        k = qkv[:, hidden + hh * head_dim:hidden + (hh + 1) * head_dim]
        v = qkv[:, 2 * hidden + hh * head_dim:2 * hidden + (hh + 1) * head_dim]
        # Contract q(1) against k(1): no in-kernel k.T transpose.
        s = lax.dot_general(q.astype(bf16), k.astype(bf16),
                            dimension_numbers=(((1,), (1,)), ((), ())),
                            preferred_element_type=f32) * sm_scale
        s = s + mask
        s = s - jnp.max(s, axis=-1, keepdims=True)
        p = jnp.exp(s)
        p = p * pl.reciprocal(jnp.sum(p, axis=-1, keepdims=True), approx=True)
        ctx = jnp.dot(p.astype(bf16), v.astype(bf16),
                      preferred_element_type=f32)            # (S, head_dim)
        # Fold the head straight into the lane-dense output projection:
        # no masked 16-lane partial stores into a merged ctx buffer.
        attn = attn + jnp.dot(
            ctx.astype(bf16),
            wo_ref[0, hh * head_dim:(hh + 1) * head_dim, :],
            preferred_element_type=f32)
    attn = attn + bo_ref[0]
    h = _layernorm(h + attn, l1g_ref[0], l1b_ref[0])

    # ------------------------------ feed forward ---------------------------- #
    ffn = jnp.dot(h.astype(bf16), win_ref[0], preferred_element_type=f32)
    ffn = ffn + bin_ref[0]
    # TODO(synk): HF BERT uses erf GELU; tanh approximation used here.
    ffn = jax.nn.gelu(ffn, approximate=True)
    ffn = jnp.dot(ffn.astype(bf16), wout_ref[0], preferred_element_type=f32)
    ffn = ffn + bout_ref[0]
    h = _layernorm(h + ffn, l2g_ref[0], l2b_ref[0])
    h_scr[...] = h                                           # carry to next layer

    # ----------------- pooler + classification head (last layer) ------------ #
    @pl.when(layer == n_layers - 1)
    def _():
        cls = h[0:1, :]                                      # CLS token (1, H)
        pooled = jnp.tanh(jnp.dot(cls.astype(bf16), pw_ref[...],
                                  preferred_element_type=f32) + pb_ref[...])
        # concat([pooled, extra]) @ W1  ==  pooled @ W1p + extra @ W1e
        z = jnp.dot(pooled.astype(bf16), w1p_ref[...], preferred_element_type=f32)
        z = z + jnp.dot(extra_ref[0].astype(bf16), w1e_ref[...],
                        preferred_element_type=f32)
        z = jnp.maximum(z + b1_ref[...], 0.0)                # ReLU
        z = z * drop_ref[0]                                  # Dropout (mask)
        o_ref[0] = (jnp.dot(z.astype(bf16), w2_ref[...],
                            preferred_element_type=f32) + b2_ref[...])


# ------------------------------- model glue -------------------------------- #

def bert_for_machinery(params, input_ids, attention_mask, extra_features, cfg,
                       *, training=False, dropout_rng=None, p_drop=0.3):
    B, S = input_ids.shape
    H, I = cfg["hidden"], cfg["inter"]
    FC, NL, L = cfg["fc_dim"], cfg["num_labels"], cfg["layers"]

    if extra_features.ndim == 1:
        extra_features = extra_features[:, None]
    E = extra_features.shape[1]
    E_pad = params["fc1_we"].shape[0]
    extra_p = jnp.zeros((B, 1, E_pad), jnp.float32).at[:, 0, :E].set(
        extra_features.astype(jnp.float32))

    # Embedding lookups (gather) + positional + token-type stay in XLA;
    # the embedding LayerNorm runs inside the kernel.
    x = (params["word_emb"][input_ids]
         + params["pos_emb"][:S][None, :, :]
         + params["type_emb"][0][None, None, :]).astype(jnp.float32)  # (B,S,H)

    # Additive attention mask, (B, 1, S); broadcast over heads in-kernel.
    mask_add = ((1.0 - attention_mask.astype(jnp.float32)) * -10000.0)[:, None, :]

    if training and p_drop > 0.0:
        if dropout_rng is None:
            dropout_rng = jax.random.PRNGKey(0)
        keep = jax.random.bernoulli(dropout_rng, 1.0 - p_drop, (B, 1, FC))
        drop_mask = keep.astype(jnp.float32) * (1.0 / (1.0 - p_drop))
    else:  # eval-mode parity with PyTorch nn.Dropout
        drop_mask = jnp.ones((B, 1, FC), jnp.float32)

    kernel = functools.partial(
        _fused_bert_kernel,
        seq=S, hidden=H, heads=cfg["heads"], head_dim=cfg["head_dim"],
        sm_scale=1.0 / (cfg["head_dim"] ** 0.5))

    per_batch3 = lambda d1, d2: pl.BlockSpec((1, d1, d2), lambda b, l: (b, 0, 0))
    per_layer3 = lambda d1, d2: pl.BlockSpec((1, d1, d2), lambda b, l: (l, 0, 0))
    shared2 = lambda d1, d2: pl.BlockSpec((d1, d2), lambda b, l: (0, 0))

    in_specs = [
        # per-batch inputs
        per_batch3(S, H),                 # x
        per_batch3(1, S),                 # additive mask
        per_batch3(1, E_pad),             # extra features (padded)
        per_batch3(1, FC),                # dropout mask
        # shared embedding LN
        shared2(1, H), shared2(1, H),
        # per-layer weights (streamed / double-buffered over the layer axis)
        per_layer3(H, 3 * H), per_layer3(1, 3 * H),
        per_layer3(H, H), per_layer3(1, H),
        per_layer3(1, H), per_layer3(1, H),
        per_layer3(H, I), per_layer3(1, I),
        per_layer3(I, H), per_layer3(1, H),
        per_layer3(1, H), per_layer3(1, H),
        # shared pooler + head
        shared2(H, H), shared2(1, H),
        shared2(H, FC), shared2(E_pad, FC), shared2(1, FC),
        shared2(FC, NL), shared2(1, NL),
    ]

    out = pl.pallas_call(
        kernel,
        out_shape=jax.ShapeDtypeStruct((B, 1, NL), jnp.float32),
        grid_spec=pltpu.PrefetchScalarGridSpec(
            num_scalar_prefetch=0,
            grid=(B, L),                                   # (parallel, arbitrary)
            in_specs=in_specs,
            out_specs=pl.BlockSpec((1, 1, NL), lambda b, l: (b, 0, 0)),
            scratch_shapes=[pltpu.VMEM((S, H), jnp.float32)],  # carried hidden
        ),
        compiler_params=pltpu.CompilerParams(
            dimension_semantics=("parallel", "arbitrary"),
            vmem_limit_bytes=32 * 1024 * 1024),
    )(x, mask_add, extra_p, drop_mask,
      params["emb_ln_g"], params["emb_ln_b"],
      params["wqkv"], params["bqkv"], params["wo"], params["bo"],
      params["ln1_g"], params["ln1_b"],
      params["w_in"], params["b_in"], params["w_out"], params["b_out"],
      params["ln2_g"], params["ln2_b"],
      params["pooler_w"], params["pooler_b"],
      params["fc1_wp"], params["fc1_we"], params["fc1_b"],
      params["cls_w"], params["cls_b"])

    return out.reshape(B, NL)


# --------------------------- deterministic params --------------------------- #

def build_params(key, cfg):
    H, I, V, S = cfg["hidden"], cfg["inter"], cfg["vocab"], cfg["seq"]
    E, FC, NL = cfg["extra_dim"], cfg["fc_dim"], cfg["num_labels"]
    L = cfg["layers"]
    E_pad = max(8, E)                          # sublane-pad the extra operand
    bf16 = jnp.bfloat16
    ks = iter(jax.random.split(key, 32))

    def w(shape, dtype=jnp.float32):
        return (jax.random.normal(next(ks), shape, jnp.float32) * 0.02).astype(dtype)

    fc1_w = jax.random.normal(next(ks), (H + E, FC), jnp.float32) * 0.02
    return {
        "word_emb": w((V, H)),
        "pos_emb": w((S, H)),
        "type_emb": w((2, H)),
        "emb_ln_g": jnp.ones((1, H), jnp.float32),
        "emb_ln_b": jnp.zeros((1, H), jnp.float32),
        # Per-layer weights stacked on a leading layer axis; Q|K|V fused.
        # Matmul weights are bf16 (MXU inputs); biases / LN params stay f32.
        "wqkv": w((L, H, 3 * H), bf16),
        "bqkv": jnp.zeros((L, 1, 3 * H), jnp.float32),
        "wo": w((L, H, H), bf16),
        "bo": jnp.zeros((L, 1, H), jnp.float32),
        "ln1_g": jnp.ones((L, 1, H), jnp.float32),
        "ln1_b": jnp.zeros((L, 1, H), jnp.float32),
        "w_in": w((L, H, I), bf16),
        "b_in": jnp.zeros((L, 1, I), jnp.float32),
        "w_out": w((L, I, H), bf16),
        "b_out": jnp.zeros((L, 1, H), jnp.float32),
        "ln2_g": jnp.ones((L, 1, H), jnp.float32),
        "ln2_b": jnp.zeros((L, 1, H), jnp.float32),
        "pooler_w": w((H, H), bf16),
        "pooler_b": jnp.zeros((1, H), jnp.float32),
        "fc1_wp": fc1_w[:H].astype(bf16),
        "fc1_we": jnp.zeros((E_pad, FC), jnp.float32).at[:E].set(
            fc1_w[H:]).astype(bf16),
        "fc1_b": jnp.zeros((1, FC), jnp.float32),
        "cls_w": w((FC, NL), bf16),
        "cls_b": jnp.zeros((1, NL), jnp.float32),
    }


# ----------------------------------- main ----------------------------------- #

if __name__ == "__main__":
    cfg = dict(batch=2, seq=8, hidden=32, heads=2, head_dim=16, inter=64,
               vocab=50, layers=2, extra_dim=5, fc_dim=256, num_labels=4)

    root = jax.random.PRNGKey(0)
    k_par, k_ids, k_extra = jax.random.split(root, 3)

    params = build_params(k_par, cfg)

    input_ids = jax.random.randint(k_ids, (cfg["batch"], cfg["seq"]), 0,
                                   cfg["vocab"], dtype=jnp.int32)
    attention_mask = jnp.ones((cfg["batch"], cfg["seq"]), jnp.float32)
    attention_mask = attention_mask.at[1, -2:].set(0.0)       # some padding
    extra_features = jax.random.normal(
        k_extra, (cfg["batch"], cfg["extra_dim"]), jnp.float32)

    fwd = jax.jit(lambda p, ids, m, xf: bert_for_machinery(p, ids, m, xf, cfg))
    logits = jax.block_until_ready(
        fwd(params, input_ids, attention_mask, extra_features))

    assert logits.shape == (cfg["batch"], cfg["num_labels"])
    assert bool(jnp.all(jnp.isfinite(logits)))
    print("KERNEL_OK")
</pallas_src>

<mosaic_0001>
module attributes {stable_mosaic.version = 11 : i64} {
  func.func @_fused_bert_kernel(%arg0: i32, %arg1: i32, %arg2: memref<1x8x32xf32, #tpu.memory_space<vmem>>, %arg3: memref<1x1x8xf32, #tpu.memory_space<vmem>>, %arg4: memref<1x1x8xf32, #tpu.memory_space<vmem>>, %arg5: memref<1x1x256xf32, #tpu.memory_space<vmem>>, %arg6: memref<1x32xf32, #tpu.memory_space<vmem>>, %arg7: memref<1x32xf32, #tpu.memory_space<vmem>>, %arg8: memref<1x32x96xbf16, #tpu.memory_space<vmem>>, %arg9: memref<1x1x96xf32, #tpu.memory_space<vmem>>, %arg10: memref<1x32x32xbf16, #tpu.memory_space<vmem>>, %arg11: memref<1x1x32xf32, #tpu.memory_space<vmem>>, %arg12: memref<1x1x32xf32, #tpu.memory_space<vmem>>, %arg13: memref<1x1x32xf32, #tpu.memory_space<vmem>>, %arg14: memref<1x32x64xbf16, #tpu.memory_space<vmem>>, %arg15: memref<1x1x64xf32, #tpu.memory_space<vmem>>, %arg16: memref<1x64x32xbf16, #tpu.memory_space<vmem>>, %arg17: memref<1x1x32xf32, #tpu.memory_space<vmem>>, %arg18: memref<1x1x32xf32, #tpu.memory_space<vmem>>, %arg19: memref<1x1x32xf32, #tpu.memory_space<vmem>>, %arg20: memref<32x32xbf16, #tpu.memory_space<vmem>>, %arg21: memref<1x32xf32, #tpu.memory_space<vmem>>, %arg22: memref<32x256xbf16, #tpu.memory_space<vmem>>, %arg23: memref<8x256xbf16, #tpu.memory_space<vmem>>, %arg24: memref<1x256xf32, #tpu.memory_space<vmem>>, %arg25: memref<256x4xbf16, #tpu.memory_space<vmem>>, %arg26: memref<1x4xf32, #tpu.memory_space<vmem>>, %arg27: memref<1x1x4xf32, #tpu.memory_space<vmem>>, %arg28: memref<8x32xf32, #tpu.memory_space<vmem>>) attributes {dimension_semantics = [#tpu.dimension_semantics<parallel>, #tpu.dimension_semantics<arbitrary>], iteration_bounds = array<i64: 2, 2>, scalar_prefetch = 0 : i64, scratch_operands = 1 : i64, tpu.core_type = #tpu.core_type<tc>, window_params = [{transform_indices = @transform_0, window_bounds = array<i64: 1, 8, 32>}, {transform_indices = @transform_1, window_bounds = array<i64: 1, 1, 8>}, {transform_indices = @transform_2, window_bounds = array<i64: 1, 1, 8>}, {transform_indices = @transform_3, window_bounds = array<i64: 1, 1, 256>}, {pipeline_mode = #tpu.pipeline_mode<synchronous>, transform_indices = @transform_4, window_bounds = array<i64: 1, 32>}, {pipeline_mode = #tpu.pipeline_mode<synchronous>, transform_indices = @transform_5, window_bounds = array<i64: 1, 32>}, {transform_indices = @transform_6, window_bounds = array<i64: 1, 32, 96>}, {transform_indices = @transform_7, window_bounds = array<i64: 1, 1, 96>}, {transform_indices = @transform_8, window_bounds = array<i64: 1, 32, 32>}, {transform_indices = @transform_9, window_bounds = array<i64: 1, 1, 32>}, {transform_indices = @transform_10, window_bounds = array<i64: 1, 1, 32>}, {transform_indices = @transform_11, window_bounds = array<i64: 1, 1, 32>}, {transform_indices = @transform_12, window_bounds = array<i64: 1, 32, 64>}, {transform_indices = @transform_13, window_bounds = array<i64: 1, 1, 64>}, {transform_indices = @transform_14, window_bounds = array<i64: 1, 64, 32>}, {transform_indices = @transform_15, window_bounds = array<i64: 1, 1, 32>}, {transform_indices = @transform_16, window_bounds = array<i64: 1, 1, 32>}, {transform_indices = @transform_17, window_bounds = array<i64: 1, 1, 32>}, {pipeline_mode = #tpu.pipeline_mode<synchronous>, transform_indices = @transform_18, window_bounds = array<i64: 32, 32>}, {pipeline_mode = #tpu.pipeline_mode<synchronous>, transform_indices = @transform_19, window_bounds = array<i64: 1, 32>}, {pipeline_mode = #tpu.pipeline_mode<synchronous>, transform_indices = @transform_20, window_bounds = array<i64: 32, 256>}, {pipeline_mode = #tpu.pipeline_mode<synchronous>, transform_indices = @transform_21, window_bounds = array<i64: 8, 256>}, {pipeline_mode = #tpu.pipeline_mode<synchronous>, transform_indices = @transform_22, window_bounds = array<i64: 1, 256>}, {pipeline_mode = #tpu.pipeline_mode<synchronous>, transform_indices = @transform_23, window_bounds = array<i64: 256, 4>}, {pipeline_mode = #tpu.pipeline_mode<synchronous>, transform_indices = @transform_24, window_bounds = array<i64: 1, 4>}, {transform_indices = @transform_25, window_bounds = array<i64: 1, 1, 4>}]} {
    %c0_i32 = arith.constant 0 : i32
    %0 = arith.cmpi eq, %arg1, %c0_i32 : i32
    %1 = arith.extui %0 : i1 to i32
    %c0_i32_0 = arith.constant 0 : i32
    %2 = arith.cmpi ne, %1, %c0_i32_0 : i32
    scf.if %2 {
      %c0_75 = arith.constant 0 : index
      %c0_76 = arith.constant 0 : index
      %c0_77 = arith.constant 0 : index
      %162 = vector.load %arg2[%c0_75, %c0_76, %c0_77] : memref<1x8x32xf32, #tpu.memory_space<vmem>>, vector<1x8x32xf32>
      %163 = vector.shape_cast %162 : vector<1x8x32xf32> to vector<8x32xf32>
      %c0_78 = arith.constant 0 : index
      %c0_79 = arith.constant 0 : index
      %164 = vector.load %arg6[%c0_78, %c0_79] : memref<1x32xf32, #tpu.memory_space<vmem>>, vector<1x32xf32>
      %c0_80 = arith.constant 0 : index
      %c0_81 = arith.constant 0 : index
      %165 = vector.load %arg7[%c0_80, %c0_81] : memref<1x32xf32, #tpu.memory_space<vmem>>, vector<1x32xf32>
      %cst_82 = arith.constant dense<0.000000e+00> : vector<8xf32>
      %166 = vector.multi_reduction <add>, %163, %cst_82 [1] : vector<8x32xf32> to vector<8xf32>
      %167 = vector.shape_cast %166 : vector<8xf32> to vector<8x1xf32>
      %cst_83 = arith.constant 3.200000e+01 : f32
      %168 = vector.broadcast %cst_83 : f32 to vector<8x1xf32>
      %169 = arith.divf %167, %168 : vector<8x1xf32>
      %170 = vector.broadcast %169 : vector<8x1xf32> to vector<8x32xf32>
      %171 = arith.subf %163, %170 : vector<8x32xf32>
      %172 = arith.mulf %171, %171 : vector<8x32xf32>
      %cst_84 = arith.constant dense<0.000000e+00> : vector<8xf32>
      %173 = vector.multi_reduction <add>, %172, %cst_84 [1] : vector<8x32xf32> to vector<8xf32>
      %174 = vector.shape_cast %173 : vector<8xf32> to vector<8x1xf32>
      %cst_85 = arith.constant 3.200000e+01 : f32
      %175 = vector.broadcast %cst_85 : f32 to vector<8x1xf32>
      %176 = arith.divf %174, %175 : vector<8x1xf32>
      %177 = vector.broadcast %169 : vector<8x1xf32> to vector<8x32xf32>
      %178 = arith.subf %163, %177 : vector<8x32xf32>
      %cst_86 = arith.constant 9.99999996E-13 : f32
      %179 = vector.broadcast %cst_86 : f32 to vector<8x1xf32>
      %180 = arith.addf %176, %179 : vector<8x1xf32>
      %181 = math.rsqrt %180 : vector<8x1xf32>
      %182 = vector.broadcast %181 : vector<8x1xf32> to vector<8x32xf32>
      %183 = arith.mulf %178, %182 : vector<8x32xf32>
      %184 = vector.broadcast %164 : vector<1x32xf32> to vector<8x32xf32>
      %185 = arith.mulf %183, %184 : vector<8x32xf32>
      %186 = vector.broadcast %165 : vector<1x32xf32> to vector<8x32xf32>
      %187 = arith.addf %185, %186 : vector<8x32xf32>
      %c0_87 = arith.constant 0 : index
      %c0_88 = arith.constant 0 : index
      %188 = vector.load %arg28[%c0_87, %c0_88] : memref<8x32xf32, #tpu.memory_space<vmem>>, vector<8x32xf32>
      tpu.vector_store %arg28[%c0_87, %c0_88], %187 {strides = array<i32>} : memref<8x32xf32, #tpu.memory_space<vmem>>, vector<8x32xf32>,
    } else {
    }
    %c0 = arith.constant 0 : index
    %c0_1 = arith.constant 0 : index
    %3 = vector.load %arg28[%c0, %c0_1] : memref<8x32xf32, #tpu.memory_space<vmem>>, vector<8x32xf32>
    %4 = arith.truncf %3 : vector<8x32xf32> to vector<8x32xbf16>
    %c0_2 = arith.constant 0 : index
    %c0_3 = arith.constant 0 : index
    %c0_4 = arith.constant 0 : index
    %5 = vector.load %arg8[%c0_2, %c0_3, %c0_4] : memref<1x32x96xbf16, #tpu.memory_space<vmem>>, vector<1x32x96xbf16>
    %6 = vector.shape_cast %5 : vector<1x32x96xbf16> to vector<32x96xbf16>
    %cst = arith.constant dense<0.000000e+00> : vector<8x96xf32>
    %7 = tpu.matmul %4, %6, %cst {dimension_numbers = #tpu.dot_dimension_numbers<[1], [0], [0], [1], [0, 0, 1, 1], [], []>} : vector<8x32xbf16>, vector<32x96xbf16>, vector<8x96xf32> -> vector<8x96xf32>
    %c0_5 = arith.constant 0 : index
    %c0_6 = arith.constant 0 : index
    %c0_7 = arith.constant 0 : index
    %8 = vector.load %arg9[%c0_5, %c0_6, %c0_7] : memref<1x1x96xf32, #tpu.memory_space<vmem>>, vector<1x1x96xf32>
    %9 = vector.shape_cast %8 : vector<1x1x96xf32> to vector<1x96xf32>
    %10 = vector.broadcast %9 : vector<1x96xf32> to vector<8x96xf32>
    %11 = arith.addf %7, %10 : vector<8x96xf32>
    %c0_8 = arith.constant 0 : index
    %c0_9 = arith.constant 0 : index
    %c0_10 = arith.constant 0 : index
    %12 = vector.load %arg3[%c0_8, %c0_9, %c0_10] : memref<1x1x8xf32, #tpu.memory_space<vmem>>, vector<1x1x8xf32>
    %13 = vector.shape_cast %12 : vector<1x1x8xf32> to vector<1x8xf32>
    %cst_11 = arith.constant 0.000000e+00 : f32
    %14 = vector.broadcast %cst_11 : f32 to vector<8x32xf32>
    %15 = vector.extract_strided_slice %11 {offsets = [0, 0], sizes = [8, 16], strides = [1, 1]} : vector<8x96xf32> to vector<8x16xf32>
    %16 = vector.extract_strided_slice %11 {offsets = [0, 32], sizes = [8, 16], strides = [1, 1]} : vector<8x96xf32> to vector<8x16xf32>
    %17 = vector.extract_strided_slice %11 {offsets = [0, 64], sizes = [8, 16], strides = [1, 1]} : vector<8x96xf32> to vector<8x16xf32>
    %18 = arith.truncf %15 : vector<8x16xf32> to vector<8x16xbf16>
    %19 = arith.truncf %16 : vector<8x16xf32> to vector<8x16xbf16>
    %cst_12 = arith.constant dense<0.000000e+00> : vector<8x8xf32>
    %20 = tpu.matmul %18, %19, %cst_12 {dimension_numbers = #tpu.dot_dimension_numbers<[1], [1], [0], [0], [0, 0, 1, 0], [], []>} : vector<8x16xbf16>, vector<8x16xbf16>, vector<8x8xf32> -> vector<8x8xf32>
    %cst_13 = arith.constant 2.500000e-01 : f32
    %21 = vector.broadcast %cst_13 : f32 to vector<8x8xf32>
    %22 = arith.mulf %20, %21 : vector<8x8xf32>
    %23 = vector.broadcast %13 : vector<1x8xf32> to vector<8x8xf32>
    %24 = arith.addf %22, %23 : vector<8x8xf32>
    %cst_14 = arith.constant dense<0xFF800000> : vector<8xf32>
    %25 = vector.multi_reduction <maximumf>, %24, %cst_14 [1] : vector<8x8xf32> to vector<8xf32>
    %26 = vector.shape_cast %25 : vector<8xf32> to vector<8x1xf32>
    %27 = vector.broadcast %26 : vector<8x1xf32> to vector<8x8xf32>
    %28 = arith.subf %24, %27 : vector<8x8xf32>
    %29 = math.exp %28 : vector<8x8xf32>
    %cst_15 = arith.constant dense<0.000000e+00> : vector<8xf32>
    %30 = vector.multi_reduction <add>, %29, %cst_15 [1] : vector<8x8xf32> to vector<8xf32>
    %31 = vector.shape_cast %30 : vector<8xf32> to vector<8x1xf32>
    %32 = tpu.reciprocal %31 {approx = true} : vector<8x1xf32> -> vector<8x1xf32>
    %33 = vector.broadcast %32 : vector<8x1xf32> to vector<8x8xf32>
    %34 = arith.mulf %29, %33 : vector<8x8xf32>
    %35 = arith.truncf %34 : vector<8x8xf32> to vector<8x8xbf16>
    %36 = arith.truncf %17 : vector<8x16xf32> to vector<8x16xbf16>
    %cst_16 = arith.constant dense<0.000000e+00> : vector<8x16xf32>
    %37 = tpu.matmul %35, %36, %cst_16 {dimension_numbers = #tpu.dot_dimension_numbers<[1], [0], [0], [1], [0, 0, 1, 1], [], []>} : vector<8x8xbf16>, vector<8x16xbf16>, vector<8x16xf32> -> vector<8x16xf32>
    %38 = arith.truncf %37 : vector<8x16xf32> to vector<8x16xbf16>
    %c0_17 = arith.constant 0 : index
    %c0_18 = arith.constant 0 : index
    %c0_19 = arith.constant 0 : index
    %39 = vector.load %arg10[%c0_17, %c0_18, %c0_19] : memref<1x32x32xbf16, #tpu.memory_space<vmem>>, vector<1x16x32xbf16>
    %40 = vector.shape_cast %39 : vector<1x16x32xbf16> to vector<16x32xbf16>
    %cst_20 = arith.constant dense<0.000000e+00> : vector<8x32xf32>
    %41 = tpu.matmul %38, %40, %cst_20 {dimension_numbers = #tpu.dot_dimension_numbers<[1], [0], [0], [1], [0, 0, 1, 1], [], []>} : vector<8x16xbf16>, vector<16x32xbf16>, vector<8x32xf32> -> vector<8x32xf32>
    %42 = arith.addf %14, %41 : vector<8x32xf32>
    %43 = vector.extract_strided_slice %11 {offsets = [0, 16], sizes = [8, 16], strides = [1, 1]} : vector<8x96xf32> to vector<8x16xf32>
    %44 = vector.extract_strided_slice %11 {offsets = [0, 48], sizes = [8, 16], strides = [1, 1]} : vector<8x96xf32> to vector<8x16xf32>
    %45 = vector.extract_strided_slice %11 {offsets = [0, 80], sizes = [8, 16], strides = [1, 1]} : vector<8x96xf32> to vector<8x16xf32>
    %46 = arith.truncf %43 : vector<8x16xf32> to vector<8x16xbf16>
    %47 = arith.truncf %44 : vector<8x16xf32> to vector<8x16xbf16>
    %cst_21 = arith.constant dense<0.000000e+00> : vector<8x8xf32>
    %48 = tpu.matmul %46, %47, %cst_21 {dimension_numbers = #tpu.dot_dimension_numbers<[1], [1], [0], [0], [0, 0, 1, 0], [], []>} : vector<8x16xbf16>, vector<8x16xbf16>, vector<8x8xf32> -> vector<8x8xf32>
    %cst_22 = arith.constant 2.500000e-01 : f32
    %49 = vector.broadcast %cst_22 : f32 to vector<8x8xf32>
    %50 = arith.mulf %48, %49 : vector<8x8xf32>
    %51 = vector.broadcast %13 : vector<1x8xf32> to vector<8x8xf32>
    %52 = arith.addf %50, %51 : vector<8x8xf32>
    %cst_23 = arith.constant dense<0xFF800000> : vector<8xf32>
    %53 = vector.multi_reduction <maximumf>, %52, %cst_23 [1] : vector<8x8xf32> to vector<8xf32>
    %54 = vector.shape_cast %53 : vector<8xf32> to vector<8x1xf32>
    %55 = vector.broadcast %54 : vector<8x1xf32> to vector<8x8xf32>
    %56 = arith.subf %52, %55 : vector<8x8xf32>
    %57 = math.exp %56 : vector<8x8xf32>
    %cst_24 = arith.constant dense<0.000000e+00> : vector<8xf32>
    %58 = vector.multi_reduction <add>, %57, %cst_24 [1] : vector<8x8xf32> to vector<8xf32>
    %59 = vector.shape_cast %58 : vector<8xf32> to vector<8x1xf32>
    %60 = tpu.reciprocal %59 {approx = true} : vector<8x1xf32> -> vector<8x1xf32>
    %61 = vector.broadcast %60 : vector<8x1xf32> to vector<8x8xf32>
    %62 = arith.mulf %57, %61 : vector<8x8xf32>
    %63 = arith.truncf %62 : vector<8x8xf32> to vector<8x8xbf16>
    %64 = arith.truncf %45 : vector<8x16xf32> to vector<8x16xbf16>
    %cst_25 = arith.constant dense<0.000000e+00> : vector<8x16xf32>
    %65 = tpu.matmul %63, %64, %cst_25 {dimension_numbers = #tpu.dot_dimension_numbers<[1], [0], [0], [1], [0, 0, 1, 1], [], []>} : vector<8x8xbf16>, vector<8x16xbf16>, vector<8x16xf32> -> vector<8x16xf32>
    %66 = arith.truncf %65 : vector<8x16xf32> to vector<8x16xbf16>
    %c0_26 = arith.constant 0 : index
    %c16 = arith.constant 16 : index
    %c0_27 = arith.constant 0 : index
    %67 = vector.load %arg10[%c0_26, %c16, %c0_27] : memref<1x32x32xbf16, #tpu.memory_space<vmem>>, vector<1x16x32xbf16>
    %68 = vector.shape_cast %67 : vector<1x16x32xbf16> to vector<16x32xbf16>
    %cst_28 = arith.constant dense<0.000000e+00> : vector<8x32xf32>
    %69 = tpu.matmul %66, %68, %cst_28 {dimension_numbers = #tpu.dot_dimension_numbers<[1], [0], [0], [1], [0, 0, 1, 1], [], []>} : vector<8x16xbf16>, vector<16x32xbf16>, vector<8x32xf32> -> vector<8x32xf32>
    %70 = arith.addf %42, %69 : vector<8x32xf32>
    %c0_29 = arith.constant 0 : index
    %c0_30 = arith.constant 0 : index
    %c0_31 = arith.constant 0 : index
    %71 = vector.load %arg11[%c0_29, %c0_30, %c0_31] : memref<1x1x32xf32, #tpu.memory_space<vmem>>, vector<1x1x32xf32>
    %72 = vector.shape_cast %71 : vector<1x1x32xf32> to vector<1x32xf32>
    %73 = vector.broadcast %72 : vector<1x32xf32> to vector<8x32xf32>
    %74 = arith.addf %70, %73 : vector<8x32xf32>
    %75 = arith.addf %3, %74 : vector<8x32xf32>
    %c0_32 = arith.constant 0 : index
    %c0_33 = arith.constant 0 : index
    %c0_34 = arith.constant 0 : index
    %76 = vector.load %arg12[%c0_32, %c0_33, %c0_34] : memref<1x1x32xf32, #tpu.memory_space<vmem>>, vector<1x1x32xf32>
    %77 = vector.shape_cast %76 : vector<1x1x32xf32> to vector<1x32xf32>
    %c0_35 = arith.constant 0 : index
    %c0_36 = arith.constant 0 : index
    %c0_37 = arith.constant 0 : index
    %78 = vector.load %arg13[%c0_35, %c0_36, %c0_37] : memref<1x1x32xf32, #tpu.memory_space<vmem>>, vector<1x1x32xf32>
    %79 = vector.shape_cast %78 : vector<1x1x32xf32> to vector<1x32xf32>
    %cst_38 = arith.constant dense<0.000000e+00> : vector<8xf32>
    %80 = vector.multi_reduction <add>, %75, %cst_38 [1] : vector<8x32xf32> to vector<8xf32>
    %81 = vector.shape_cast %80 : vector<8xf32> to vector<8x1xf32>
    %cst_39 = arith.constant 3.200000e+01 : f32
    %82 = vector.broadcast %cst_39 : f32 to vector<8x1xf32>
    %83 = arith.divf %81, %82 : vector<8x1xf32>
    %84 = vector.broadcast %83 : vector<8x1xf32> to vector<8x32xf32>
    %85 = arith.subf %75, %84 : vector<8x32xf32>
    %86 = arith.mulf %85, %85 : vector<8x32xf32>
    %cst_40 = arith.constant dense<0.000000e+00> : vector<8xf32>
    %87 = vector.multi_reduction <add>, %86, %cst_40 [1] : vector<8x32xf32> to vector<8xf32>
    %88 = vector.shape_cast %87 : vector<8xf32> to vector<8x1xf32>
    %cst_41 = arith.constant 3.200000e+01 : f32
    %89 = vector.broadcast %cst_41 : f32 to vector<8x1xf32>
    %90 = arith.divf %88, %89 : vector<8x1xf32>
    %91 = vector.broadcast %83 : vector<8x1xf32> to vector<8x32xf32>
    %92 = arith.subf %75, %91 : vector<8x32xf32>
    %cst_42 = arith.constant 9.99999996E-13 : f32
    %93 = vector.broadcast %cst_42 : f32 to vector<8x1xf32>
    %94 = arith.addf %90, %93 : vector<8x1xf32>
    %95 = math.rsqrt %94 : vector<8x1xf32>
    %96 = vector.broadcast %95 : vector<8x1xf32> to vector<8x32xf32>
    %97 = arith.mulf %92, %96 : vector<8x32xf32>
    %98 = vector.broadcast %77 : vector<1x32xf32> to vector<8x32xf32>
    %99 = arith.mulf %97, %98 : vector<8x32xf32>
    %100 = vector.broadcast %79 : vector<1x32xf32> to vector<8x32xf32>
    %101 = arith.addf %99, %100 : vector<8x32xf32>
    %102 = arith.truncf %101 : vector<8x32xf32> to vector<8x32xbf16>
    %c0_43 = arith.constant 0 : index
    %c0_44 = arith.constant 0 : index
    %c0_45 = arith.constant 0 : index
    %103 = vector.load %arg14[%c0_43, %c0_44, %c0_45] : memref<1x32x64xbf16, #tpu.memory_space<vmem>>, vector<1x32x64xbf16>
    %104 = vector.shape_cast %103 : vector<1x32x64xbf16> to vector<32x64xbf16>
    %cst_46 = arith.constant dense<0.000000e+00> : vector<8x64xf32>
    %105 = tpu.matmul %102, %104, %cst_46 {dimension_numbers = #tpu.dot_dimension_numbers<[1], [0], [0], [1], [0, 0, 1, 1], [], []>} : vector<8x32xbf16>, vector<32x64xbf16>, vector<8x64xf32> -> vector<8x64xf32>
    %c0_47 = arith.constant 0 : index
    %c0_48 = arith.constant 0 : index
    %c0_49 = arith.constant 0 : index
    %106 = vector.load %arg15[%c0_47, %c0_48, %c0_49] : memref<1x1x64xf32, #tpu.memory_space<vmem>>, vector<1x1x64xf32>
    %107 = vector.shape_cast %106 : vector<1x1x64xf32> to vector<1x64xf32>
    %108 = vector.broadcast %107 : vector<1x64xf32> to vector<8x64xf32>
    %109 = arith.addf %105, %108 : vector<8x64xf32>
    %110 = arith.mulf %109, %109 : vector<8x64xf32>
    %111 = arith.mulf %109, %110 : vector<8x64xf32>
    %cst_50 = arith.constant 4.471500e-02 : f32
    %112 = vector.broadcast %cst_50 : f32 to vector<8x64xf32>
    %113 = arith.mulf %112, %111 : vector<8x64xf32>
    %114 = arith.addf %109, %113 : vector<8x64xf32>
    %cst_51 = arith.constant 0.797884583 : f32
    %115 = vector.broadcast %cst_51 : f32 to vector<8x64xf32>
    %116 = arith.mulf %115, %114 : vector<8x64xf32>
    %117 = math.tanh %116 : vector<8x64xf32>
    %cst_52 = arith.constant 1.000000e+00 : f32
    %118 = vector.broadcast %cst_52 : f32 to vector<8x64xf32>
    %119 = arith.addf %118, %117 : vector<8x64xf32>
    %cst_53 = arith.constant 5.000000e-01 : f32
    %120 = vector.broadcast %cst_53 : f32 to vector<8x64xf32>
    %121 = arith.mulf %120, %119 : vector<8x64xf32>
    %122 = arith.mulf %109, %121 : vector<8x64xf32>
    %123 = arith.truncf %122 : vector<8x64xf32> to vector<8x64xbf16>
    %c0_54 = arith.constant 0 : index
    %c0_55 = arith.constant 0 : index
    %c0_56 = arith.constant 0 : index
    %124 = vector.load %arg16[%c0_54, %c0_55, %c0_56] : memref<1x64x32xbf16, #tpu.memory_space<vmem>>, vector<1x64x32xbf16>
    %125 = vector.shape_cast %124 : vector<1x64x32xbf16> to vector<64x32xbf16>
    %cst_57 = arith.constant dense<0.000000e+00> : vector<8x32xf32>
    %126 = tpu.matmul %123, %125, %cst_57 {dimension_numbers = #tpu.dot_dimension_numbers<[1], [0], [0], [1], [0, 0, 1, 1], [], []>} : vector<8x64xbf16>, vector<64x32xbf16>, vector<8x32xf32> -> vector<8x32xf32>
    %c0_58 = arith.constant 0 : index
    %c0_59 = arith.constant 0 : index
    %c0_60 = arith.constant 0 : index
    %127 = vector.load %arg17[%c0_58, %c0_59, %c0_60] : memref<1x1x32xf32, #tpu.memory_space<vmem>>, vector<1x1x32xf32>
    %128 = vector.shape_cast %127 : vector<1x1x32xf32> to vector<1x32xf32>
    %129 = vector.broadcast %128 : vector<1x32xf32> to vector<8x32xf32>
    %130 = arith.addf %126, %129 : vector<8x32xf32>
    %131 = arith.addf %101, %130 : vector<8x32xf32>
    %c0_61 = arith.constant 0 : index
    %c0_62 = arith.constant 0 : index
    %c0_63 = arith.constant 0 : index
    %132 = vector.load %arg18[%c0_61, %c0_62, %c0_63] : memref<1x1x32xf32, #tpu.memory_space<vmem>>, vector<1x1x32xf32>
    %133 = vector.shape_cast %132 : vector<1x1x32xf32> to vector<1x32xf32>
    %c0_64 = arith.constant 0 : index
    %c0_65 = arith.constant 0 : index
    %c0_66 = arith.constant 0 : index
    %134 = vector.load %arg19[%c0_64, %c0_65, %c0_66] : memref<1x1x32xf32, #tpu.memory_space<vmem>>, vector<1x1x32xf32>
    %135 = vector.shape_cast %134 : vector<1x1x32xf32> to vector<1x32xf32>
    %cst_67 = arith.constant dense<0.000000e+00> : vector<8xf32>
    %136 = vector.multi_reduction <add>, %131, %cst_67 [1] : vector<8x32xf32> to vector<8xf32>
    %137 = vector.shape_cast %136 : vector<8xf32> to vector<8x1xf32>
    %cst_68 = arith.constant 3.200000e+01 : f32
    %138 = vector.broadcast %cst_68 : f32 to vector<8x1xf32>
    %139 = arith.divf %137, %138 : vector<8x1xf32>
    %140 = vector.broadcast %139 : vector<8x1xf32> to vector<8x32xf32>
    %141 = arith.subf %131, %140 : vector<8x32xf32>
    %142 = arith.mulf %141, %141 : vector<8x32xf32>
    %cst_69 = arith.constant dense<0.000000e+00> : vector<8xf32>
    %143 = vector.multi_reduction <add>, %142, %cst_69 [1] : vector<8x32xf32> to vector<8xf32>
    %144 = vector.shape_cast %143 : vector<8xf32> to vector<8x1xf32>
    %cst_70 = arith.constant 3.200000e+01 : f32
    %145 = vector.broadcast %cst_70 : f32 to vector<8x1xf32>
    %146 = arith.divf %144, %145 : vector<8x1xf32>
    %147 = vector.broadcast %139 : vector<8x1xf32> to vector<8x32xf32>
    %148 = arith.subf %131, %147 : vector<8x32xf32>
    %cst_71 = arith.constant 9.99999996E-13 : f32
    %149 = vector.broadcast %cst_71 : f32 to vector<8x1xf32>
    %150 = arith.addf %146, %149 : vector<8x1xf32>
    %151 = math.rsqrt %150 : vector<8x1xf32>
    %152 = vector.broadcast %151 : vector<8x1xf32> to vector<8x32xf32>
    %153 = arith.mulf %148, %152 : vector<8x32xf32>
    %154 = vector.broadcast %133 : vector<1x32xf32> to vector<8x32xf32>
    %155 = arith.mulf %153, %154 : vector<8x32xf32>
    %156 = vector.broadcast %135 : vector<1x32xf32> to vector<8x32xf32>
    %157 = arith.addf %155, %156 : vector<8x32xf32>
    %c0_72 = arith.constant 0 : index
    %c0_73 = arith.constant 0 : index
    %158 = vector.load %arg28[%c0_72, %c0_73] : memref<8x32xf32, #tpu.memory_space<vmem>>, vector<8x32xf32>
    tpu.vector_store %arg28[%c0_72, %c0_73], %157 {strides = array<i32>} : memref<8x32xf32, #tpu.memory_space<vmem>>, vector<8x32xf32>,
    %c1_i32 = arith.constant 1 : i32
    %159 = arith.cmpi eq, %arg1, %c1_i32 : i32
    %160 = arith.extui %159 : i1 to i32
    %c0_i32_74 = arith.constant 0 : i32
    %161 = arith.cmpi ne, %160, %c0_i32_74 : i32
    scf.if %161 {
      %162 = vector.extract_strided_slice %157 {offsets = [0, 0], sizes = [1, 32], strides = [1, 1]} : vector<8x32xf32> to vector<1x32xf32>
      %163 = arith.truncf %162 : vector<1x32xf32> to vector<1x32xbf16>
      %c0_75 = arith.constant 0 : index
      %c0_76 = arith.constant 0 : index
      %164 = vector.load %arg20[%c0_75, %c0_76] : memref<32x32xbf16, #tpu.memory_space<vmem>>, vector<32x32xbf16>
      %cst_77 = arith.constant dense<0.000000e+00> : vector<1x32xf32>
      %165 = tpu.matmul %163, %164, %cst_77 {dimension_numbers = #tpu.dot_dimension_numbers<[1], [0], [0], [1], [0, 0, 1, 1], [], []>} : vector<1x32xbf16>, vector<32x32xbf16>, vector<1x32xf32> -> vector<1x32xf32>
      %c0_78 = arith.constant 0 : index
      %c0_79 = arith.constant 0 : index
      %166 = vector.load %arg21[%c0_78, %c0_79] : memref<1x32xf32, #tpu.memory_space<vmem>>, vector<1x32xf32>
      %167 = arith.addf %165, %166 : vector<1x32xf32>
      %168 = math.tanh %167 : vector<1x32xf32>
      %169 = arith.truncf %168 : vector<1x32xf32> to vector<1x32xbf16>
      %c0_80 = arith.constant 0 : index
      %c0_81 = arith.constant 0 : index
      %170 = vector.load %arg22[%c0_80, %c0_81] : memref<32x256xbf16, #tpu.memory_space<vmem>>, vector<32x256xbf16>
      %cst_82 = arith.constant dense<0.000000e+00> : vector<1x256xf32>
      %171 = tpu.matmul %169, %170, %cst_82 {dimension_numbers = #tpu.dot_dimension_numbers<[1], [0], [0], [1], [0, 0, 1, 1], [], []>} : vector<1x32xbf16>, vector<32x256xbf16>, vector<1x256xf32> -> vector<1x256xf32>
      %c0_83 = arith.constant 0 : index
      %c0_84 = arith.constant 0 : index
      %c0_85 = arith.constant 0 : index
      %172 = vector.load %arg4[%c0_83, %c0_84, %c0_85] : memref<1x1x8xf32, #tpu.memory_space<vmem>>, vector<1x1x8xf32>
      %173 = vector.shape_cast %172 : vector<1x1x8xf32> to vector<1x8xf32>
      %174 = arith.truncf %173 : vector<1x8xf32> to vector<1x8xbf16>
      %c0_86 = arith.constant 0 : index
      %c0_87 = arith.constant 0 : index
      %175 = vector.load %arg23[%c0_86, %c0_87] : memref<8x256xbf16, #tpu.memory_space<vmem>>, vector<8x256xbf16>
      %cst_88 = arith.constant dense<0.000000e+00> : vector<1x256xf32>
      %176 = tpu.matmul %174, %175, %cst_88 {dimension_numbers = #tpu.dot_dimension_numbers<[1], [0], [0], [1], [0, 0, 1, 1], [], []>} : vector<1x8xbf16>, vector<8x256xbf16>, vector<1x256xf32> -> vector<1x256xf32>
      %177 = arith.addf %171, %176 : vector<1x256xf32>
      %c0_89 = arith.constant 0 : index
      %c0_90 = arith.constant 0 : index
      %178 = vector.load %arg24[%c0_89, %c0_90] : memref<1x256xf32, #tpu.memory_space<vmem>>, vector<1x256xf32>
      %179 = arith.addf %177, %178 : vector<1x256xf32>
      %cst_91 = arith.constant 0.000000e+00 : f32
      %180 = vector.broadcast %cst_91 : f32 to vector<1x256xf32>
      %181 = arith.maximumf %179, %180 : vector<1x256xf32>
      %c0_92 = arith.constant 0 : index
      %c0_93 = arith.constant 0 : index
      %c0_94 = arith.constant 0 : index
      %182 = vector.load %arg5[%c0_92, %c0_93, %c0_94] : memref<1x1x256xf32, #tpu.memory_space<vmem>>, vector<1x1x256xf32>
      %183 = vector.shape_cast %182 : vector<1x1x256xf32> to vector<1x256xf32>
      %184 = arith.mulf %181, %183 : vector<1x256xf32>
      %185 = arith.truncf %184 : vector<1x256xf32> to vector<1x256xbf16>
      %c0_95 = arith.constant 0 : index
      %c0_96 = arith.constant 0 : index
      %186 = vector.load %arg25[%c0_95, %c0_96] : memref<256x4xbf16, #tpu.memory_space<vmem>>, vector<256x4xbf16>
      %cst_97 = arith.constant dense<0.000000e+00> : vector<1x4xf32>
      %187 = tpu.matmul %185, %186, %cst_97 {dimension_numbers = #tpu.dot_dimension_numbers<[1], [0], [0], [1], [0, 0, 1, 1], [], []>} : vector<1x256xbf16>, vector<256x4xbf16>, vector<1x4xf32> -> vector<1x4xf32>
      %c0_98 = arith.constant 0 : index
      %c0_99 = arith.constant 0 : index
      %188 = vector.load %arg26[%c0_98, %c0_99] : memref<1x4xf32, #tpu.memory_space<vmem>>, vector<1x4xf32>
      %189 = arith.addf %187, %188 : vector<1x4xf32>
      %c0_100 = arith.constant 0 : index
      %c0_101 = arith.constant 0 : index
      %c0_102 = arith.constant 0 : index
      %190 = vector.load %arg27[%c0_100, %c0_101, %c0_102] : memref<1x1x4xf32, #tpu.memory_space<vmem>>, vector<1x1x4xf32>
      %191 = vector.shape_cast %190 : vector<1x1x4xf32> to vector<1x4xf32>
      %192 = vector.shape_cast %189 : vector<1x4xf32> to vector<1x1x4xf32>
      tpu.vector_store %arg27[%c0_100, %c0_101, %c0_102], %192 {strides = array<i32>} : memref<1x1x4xf32, #tpu.memory_space<vmem>>, vector<1x1x4xf32>,
    } else {
    }
    return
  }
  func.func @transform_0(%arg0: i32, %arg1: i32) -> (i32, i32, i32) {
    %c0_i32 = arith.constant 0 : i32
    %c0_i32_0 = arith.constant 0 : i32
    %c0_i32_1 = arith.constant 0 : i32
    return %arg0, %c0_i32, %c0_i32_0 : i32, i32, i32
  }
  func.func @transform_1(%arg0: i32, %arg1: i32) -> (i32, i32, i32) {
    %c0_i32 = arith.constant 0 : i32
    %c0_i32_0 = arith.constant 0 : i32
    %c0_i32_1 = arith.constant 0 : i32
    return %arg0, %c0_i32, %c0_i32_0 : i32, i32, i32
  }
  func.func @transform_2(%arg0: i32, %arg1: i32) -> (i32, i32, i32) {
    %c0_i32 = arith.constant 0 : i32
    %c0_i32_0 = arith.constant 0 : i32
    %c0_i32_1 = arith.constant 0 : i32
    return %arg0, %c0_i32, %c0_i32_0 : i32, i32, i32
  }
  func.func @transform_3(%arg0: i32, %arg1: i32) -> (i32, i32, i32) {
    %c0_i32 = arith.constant 0 : i32
    %c0_i32_0 = arith.constant 0 : i32
    %c0_i32_1 = arith.constant 0 : i32
    return %arg0, %c0_i32, %c0_i32_0 : i32, i32, i32
  }
  func.func @transform_4(%arg0: i32, %arg1: i32) -> (i32, i32) {
    %c0_i32 = arith.constant 0 : i32
    %c0_i32_0 = arith.constant 0 : i32
    %c0_i32_1 = arith.constant 0 : i32
    return %c0_i32, %c0_i32_0 : i32, i32
  }
  func.func @transform_5(%arg0: i32, %arg1: i32) -> (i32, i32) {
    %c0_i32 = arith.constant 0 : i32
    %c0_i32_0 = arith.constant 0 : i32
    %c0_i32_1 = arith.constant 0 : i32
    return %c0_i32, %c0_i32_0 : i32, i32
  }
  func.func @transform_6(%arg0: i32, %arg1: i32) -> (i32, i32, i32) {
    %c0_i32 = arith.constant 0 : i32
    %c0_i32_0 = arith.constant 0 : i32
    %c0_i32_1 = arith.constant 0 : i32
    return %arg1, %c0_i32, %c0_i32_0 : i32, i32, i32
  }
  func.func @transform_7(%arg0: i32, %arg1: i32) -> (i32, i32, i32) {
    %c0_i32 = arith.constant 0 : i32
    %c0_i32_0 = arith.constant 0 : i32
    %c0_i32_1 = arith.constant 0 : i32
    return %arg1, %c0_i32, %c0_i32_0 : i32, i32, i32
  }
  func.func @transform_8(%arg0: i32, %arg1: i32) -> (i32, i32, i32) {
    %c0_i32 = arith.constant 0 : i32
    %c0_i32_0 = arith.constant 0 : i32
    %c0_i32_1 = arith.constant 0 : i32
    return %arg1, %c0_i32, %c0_i32_0 : i32, i32, i32
  }
  func.func @transform_9(%arg0: i32, %arg1: i32) -> (i32, i32, i32) {
    %c0_i32 = arith.constant 0 : i32
    %c0_i32_0 = arith.constant 0 : i32
    %c0_i32_1 = arith.constant 0 : i32
    return %arg1, %c0_i32, %c0_i32_0 : i32, i32, i32
  }
  func.func @transform_10(%arg0: i32, %arg1: i32) -> (i32, i32, i32) {
    %c0_i32 = arith.constant 0 : i32
    %c0_i32_0 = arith.constant 0 : i32
    %c0_i32_1 = arith.constant 0 : i32
    return %arg1, %c0_i32, %c0_i32_0 : i32, i32, i32
  }
  func.func @transform_11(%arg0: i32, %arg1: i32) -> (i32, i32, i32) {
    %c0_i32 = arith.constant 0 : i32
    %c0_i32_0 = arith.constant 0 : i32
    %c0_i32_1 = arith.constant 0 : i32
    return %arg1, %c0_i32, %c0_i32_0 : i32, i32, i32
  }
  func.func @transform_12(%arg0: i32, %arg1: i32) -> (i32, i32, i32) {
    %c0_i32 = arith.constant 0 : i32
    %c0_i32_0 = arith.constant 0 : i32
    %c0_i32_1 = arith.constant 0 : i32
    return %arg1, %c0_i32, %c0_i32_0 : i32, i32, i32
  }
  func.func @transform_13(%arg0: i32, %arg1: i32) -> (i32, i32, i32) {
    %c0_i32 = arith.constant 0 : i32
    %c0_i32_0 = arith.constant 0 : i32
    %c0_i32_1 = arith.constant 0 : i32
    return %arg1, %c0_i32, %c0_i32_0 : i32, i32, i32
  }
  func.func @transform_14(%arg0: i32, %arg1: i32) -> (i32, i32, i32) {
    %c0_i32 = arith.constant 0 : i32
    %c0_i32_0 = arith.constant 0 : i32
    %c0_i32_1 = arith.constant 0 : i32
    return %arg1, %c0_i32, %c0_i32_0 : i32, i32, i32
  }
  func.func @transform_15(%arg0: i32, %arg1: i32) -> (i32, i32, i32) {
    %c0_i32 = arith.constant 0 : i32
    %c0_i32_0 = arith.constant 0 : i32
    %c0_i32_1 = arith.constant 0 : i32
    return %arg1, %c0_i32, %c0_i32_0 : i32, i32, i32
  }
  func.func @transform_16(%arg0: i32, %arg1: i32) -> (i32, i32, i32) {
    %c0_i32 = arith.constant 0 : i32
    %c0_i32_0 = arith.constant 0 : i32
    %c0_i32_1 = arith.constant 0 : i32
    return %arg1, %c0_i32, %c0_i32_0 : i32, i32, i32
  }
  func.func @transform_17(%arg0: i32, %arg1: i32) -> (i32, i32, i32) {
    %c0_i32 = arith.constant 0 : i32
    %c0_i32_0 = arith.constant 0 : i32
    %c0_i32_1 = arith.constant 0 : i32
    return %arg1, %c0_i32, %c0_i32_0 : i32, i32, i32
  }
  func.func @transform_18(%arg0: i32, %arg1: i32) -> (i32, i32) {
    %c0_i32 = arith.constant 0 : i32
    %c0_i32_0 = arith.constant 0 : i32
    %c0_i32_1 = arith.constant 0 : i32
    return %c0_i32, %c0_i32_0 : i32, i32
  }
  func.func @transform_19(%arg0: i32, %arg1: i32) -> (i32, i32) {
    %c0_i32 = arith.constant 0 : i32
    %c0_i32_0 = arith.constant 0 : i32
    %c0_i32_1 = arith.constant 0 : i32
    return %c0_i32, %c0_i32_0 : i32, i32
  }
  func.func @transform_20(%arg0: i32, %arg1: i32) -> (i32, i32) {
    %c0_i32 = arith.constant 0 : i32
    %c0_i32_0 = arith.constant 0 : i32
    %c0_i32_1 = arith.constant 0 : i32
    return %c0_i32, %c0_i32_0 : i32, i32
  }
  func.func @transform_21(%arg0: i32, %arg1: i32) -> (i32, i32) {
    %c0_i32 = arith.constant 0 : i32
    %c0_i32_0 = arith.constant 0 : i32
    %c0_i32_1 = arith.constant 0 : i32
    return %c0_i32, %c0_i32_0 : i32, i32
  }
  func.func @transform_22(%arg0: i32, %arg1: i32) -> (i32, i32) {
    %c0_i32 = arith.constant 0 : i32
    %c0_i32_0 = arith.constant 0 : i32
    %c0_i32_1 = arith.constant 0 : i32
    return %c0_i32, %c0_i32_0 : i32, i32
  }
  func.func @transform_23(%arg0: i32, %arg1: i32) -> (i32, i32) {
    %c0_i32 = arith.constant 0 : i32
    %c0_i32_0 = arith.constant 0 : i32
    %c0_i32_1 = arith.constant 0 : i32
    return %c0_i32, %c0_i32_0 : i32, i32
  }
  func.func @transform_24(%arg0: i32, %arg1: i32) -> (i32, i32) {
    %c0_i32 = arith.constant 0 : i32
    %c0_i32_0 = arith.constant 0 : i32
    %c0_i32_1 = arith.constant 0 : i32
    return %c0_i32, %c0_i32_0 : i32, i32
  }
  func.func @transform_25(%arg0: i32, %arg1: i32) -> (i32, i32, i32) {
    %c0_i32 = arith.constant 0 : i32
    %c0_i32_0 = arith.constant 0 : i32
    %c0_i32_1 = arith.constant 0 : i32
    return %arg0, %c0_i32, %c0_i32_0 : i32, i32, i32
  }
}

</mosaic_0001>

<llo_original>
// kernel: _lambda_.1
$region0: #{_lambda_.1}
  #allocation0 [shape = 'u32[]', space=smem, size = 0x4, offset = 0x4, fixed_abs, tag = 'smem constant byte address 0x4 - core index']
  #allocation1 [shape = 'u32[72,128]{1,0:T(1,128)}', space=vmem, size = 0x9000, scoped, tag = 'internal scratch']
  #allocation2 [shape = 'f32[8,32]{1,0:T(8,128)}', space=vmem, size = 0x1000, scoped, tag = 'scratch operand']
  %s0 = inlined_call_operand.vmem [shape: f32[2,8,32], index: 0, kind: input, shape index: {}]
  %s1 = inlined_call_operand.vmem [shape: f32[2,1,8], index: 1, kind: input, shape index: {}]
  %s2 = inlined_call_operand.vmem [shape: f32[2,1,8], index: 2, kind: input, shape index: {}]
  %s3 = inlined_call_operand.vmem [shape: f32[2,1,256], index: 3, kind: input, shape index: {}]
  %s4 = inlined_call_operand.vmem [shape: f32[1,32], index: 4, kind: input, shape index: {}]
  %s5 = inlined_call_operand.vmem [shape: f32[1,32], index: 5, kind: input, shape index: {}]
  %s6 = inlined_call_operand.vmem [shape: bf16[2,32,96], index: 6, kind: input, shape index: {}]
  %s7 = inlined_call_operand.vmem [shape: f32[2,1,96], index: 7, kind: input, shape index: {}]
  %s8 = inlined_call_operand.vmem [shape: bf16[2,32,32], index: 8, kind: input, shape index: {}]
  %s9 = inlined_call_operand.vmem [shape: f32[2,1,32], index: 9, kind: input, shape index: {}]
  %s10 = inlined_call_operand.vmem [shape: f32[2,1,32], index: 10, kind: input, shape index: {}]
  %s11 = inlined_call_operand.vmem [shape: f32[2,1,32], index: 11, kind: input, shape index: {}]
  %s12 = inlined_call_operand.vmem [shape: bf16[2,32,64], index: 12, kind: input, shape index: {}]
  %s13 = inlined_call_operand.vmem [shape: f32[2,1,64], index: 13, kind: input, shape index: {}]
  %s14 = inlined_call_operand.vmem [shape: bf16[2,64,32], index: 14, kind: input, shape index: {}]
  %s15 = inlined_call_operand.vmem [shape: f32[2,1,32], index: 15, kind: input, shape index: {}]
  %s16 = inlined_call_operand.vmem [shape: f32[2,1,32], index: 16, kind: input, shape index: {}]
  %s17 = inlined_call_operand.vmem [shape: f32[2,1,32], index: 17, kind: input, shape index: {}]
  %s18 = inlined_call_operand.vmem [shape: bf16[32,32], index: 18, kind: input, shape index: {}]
  %s19 = inlined_call_operand.vmem [shape: f32[1,32], index: 19, kind: input, shape index: {}]
  %s20 = inlined_call_operand.vmem [shape: bf16[32,256], index: 20, kind: input, shape index: {}]
  %s21 = inlined_call_operand.vmem [shape: bf16[8,256], index: 21, kind: input, shape index: {}]
  %s22 = inlined_call_operand.vmem [shape: f32[1,256], index: 22, kind: input, shape index: {}]
  %s23 = inlined_call_operand.vmem [shape: bf16[256,4], index: 23, kind: input, shape index: {}]
  %s24 = inlined_call_operand.vmem [shape: f32[1,4], index: 24, kind: input, shape index: {}]
  %s25 = inlined_call_operand.hbm [shape: f32[2,1,4], index: 25, kind: output, shape index: {}]
  %s26 = sld [smem:[#allocation0]]
  $region141: #{_lambda_.1} parent=0
    _
  %s28 = ssub.s32 1, %s26
  %s29 = scalar_select 0, %s28, %s26
  $region1: #{_lambda_.1} parent=0
    #allocation3 [shape = 'u8[1024]{0}', space=vmem, size = 0x400, scoped, tag = 'output window, operand 0']
    #allocation4 [shape = 's32[2]{0}', space=sflag, size = 0x8, scoped, tag = 'scoped memory for _lambda_.1']
    %30 = vsyncpa [#allocation4], 0
    %s31 = scalar_lea.sflag [#allocation4], 1
    %32 = vsyncpa %s31, 0
    loop: start=0, step=1, limit=6
    $region2: #{_lambda_.1} parent=1 // loop_pre_header
      _
    $region3: #{_lambda_.1} parent=1 // loop_header
      %s34 = sphi 0, %s38
      %p35 = scmp.ge.s32.totalorder %s34, 6
      %s41 = sphi 0, %s53
      %s42 = sphi 0, %s49
      %s43 = sphi 0, %s41
      %s44 = sphi 0, %s42
      %s45 = sphi 0, %s43
      %s46 = sphi 0, %s44
      %s56 = sphi 0, %s58
      %s59 = sphi 0, %s56
      %s60 = sphi 0, %s59
      %s76 = sphi 0, %s60
      %s82 = sphi 0, %s84
      %s85 = sphi 0, %s82
      %s86 = sphi 0, %s85
      %s102 = sphi 0, %s86
      %s108 = sphi 0, %s110
      %s111 = sphi 0, %s108
      %s112 = sphi 0, %s111
      %s128 = sphi 0, %s112
      %s134 = sphi 0, %s136
      %s137 = sphi 0, %s134
      %s138 = sphi 0, %s137
      %s154 = sphi 0, %s138
      %s158 = sphi 0, %s158
      %s160 = sphi 0, %s158
      %s161 = sphi 0, %s160
      %s175 = sphi 0, %s161
      %s179 = sphi 0, %s179
      %s181 = sphi 0, %s179
      %s182 = sphi 0, %s181
      %s196 = sphi 0, %s182
      %s202 = sphi 0, %s204
      %s205 = sphi 0, %s202
      %s206 = sphi 0, %s205
      %s222 = sphi 0, %s206
      %s228 = sphi 0, %s230
      %s231 = sphi 0, %s228
      %s232 = sphi 0, %s231
      %s248 = sphi 0, %s232
      %s254 = sphi 0, %s256
      %s257 = sphi 0, %s254
      %s258 = sphi 0, %s257
      %s274 = sphi 0, %s258
      %s280 = sphi 0, %s282
      %s283 = sphi 0, %s280
      %s284 = sphi 0, %s283
      %s300 = sphi 0, %s284
      %s306 = sphi 0, %s308
      %s309 = sphi 0, %s306
      %s310 = sphi 0, %s309
      %s326 = sphi 0, %s310
      %s332 = sphi 0, %s334
      %s335 = sphi 0, %s332
      %s336 = sphi 0, %s335
      %s352 = sphi 0, %s336
      %s358 = sphi 0, %s360
      %s361 = sphi 0, %s358
      %s362 = sphi 0, %s361
      %s378 = sphi 0, %s362
      %s384 = sphi 0, %s386
      %s387 = sphi 0, %s384
      %s388 = sphi 0, %s387
      %s404 = sphi 0, %s388
      %s410 = sphi 0, %s412
      %s413 = sphi 0, %s410
      %s414 = sphi 0, %s413
      %s430 = sphi 0, %s414
      %s436 = sphi 0, %s438
      %s439 = sphi 0, %s436
      %s440 = sphi 0, %s439
      %s456 = sphi 0, %s440
      %s462 = sphi 0, %s464
      %s465 = sphi 0, %s462
      %s466 = sphi 0, %s465
      %s482 = sphi 0, %s466
      %s488 = sphi 0, %s490
      %s491 = sphi 0, %s488
      %s492 = sphi 0, %s491
      %s508 = sphi 0, %s492
      %s512 = sphi 0, %s512
      %s514 = sphi 0, %s512
      %s515 = sphi 0, %s514
      %s529 = sphi 0, %s515
      %s533 = sphi 0, %s533
      %s535 = sphi 0, %s533
      %s536 = sphi 0, %s535
      %s550 = sphi 0, %s536
      %s554 = sphi 0, %s554
      %s556 = sphi 0, %s554
      %s557 = sphi 0, %s556
      %s571 = sphi 0, %s557
      %s575 = sphi 0, %s575
      %s577 = sphi 0, %s575
      %s578 = sphi 0, %s577
      %s592 = sphi 0, %s578
      %s596 = sphi 0, %s596
      %s598 = sphi 0, %s596
      %s599 = sphi 0, %s598
      %s613 = sphi 0, %s599
      %s617 = sphi 0, %s617
      %s619 = sphi 0, %s617
      %s620 = sphi 0, %s619
      %s634 = sphi 0, %s620
      %s638 = sphi 0, %s638
      %s640 = sphi 0, %s638
      %s641 = sphi 0, %s640
      %s655 = sphi 0, %s641
      %s661 = sphi 0, %s663
      %s664 = sphi 0, %s661
      %s665 = sphi 0, %s664
      %s681 = sphi 0, %s665
    $region4: #{_lambda_.1} parent=1 // loop_header_branch
      %37 = sbr.rel (%p35) target = $region8
    $region5: #{_lambda_.1} parent=1 // loop_body
      %s39 = ssub.s32 %s34, 1
      %s40 = ssub.s32 %s34, 2
      %s47 = sadd.s32 1, %s42
      %p48 = scmp.ge.s32.totalorder %s47, 2
      %s49 = scalar_select %p48, 0, %s47
      %s50 = sadd.s32 1, %s41
      %s51 = scalar_select %p48, %s50, %s41
      %p52 = scmp.ge.s32.totalorder %s51, 2
      %s53 = scalar_select %p52, 0, %s51
      %s54 = ssub.s32 %s41, %s53
      %p55 = scmp.eq.s32.totalorder %s54, 0
      %s57 = sadd.s32 %s56, 1
      %s58 = scalar_select %p55, %s56, %s57
      %p61 = pneg %p55
      %p62 = scmp.eq.s32.totalorder %s34, 3
      %p63 = por %p61, %p62
      %p64 = scmp.ne.s32.totalorder %s56, %s59
      %p65 = scmp.eq.s32.totalorder %s34, 0
      %p66 = por %p64, %p65
      %p67 = scmp.ne.s32.totalorder %s56, %s59
      %p68 = scmp.eq.s32.totalorder %s39, 3
      %p69 = por %p67, %p68
      %p70 = scmp.ne.s32.totalorder %s59, %s60
      %p71 = scmp.eq.s32.totalorder %s39, 0
      %p72 = por %p70, %p71
      %p73 = scmp.ne.s32.totalorder %s59, %s60
      %p74 = scmp.eq.s32.totalorder %s40, 3
      %p75 = por %p73, %p74
      %p77 = scmp.ne.s32.totalorder %s60, %s76
      %p78 = scmp.eq.s32.totalorder %s40, 0
      %p79 = por %p77, %p78
      %s80 = ssub.s32 %s41, %s53
      %p81 = scmp.eq.s32.totalorder %s80, 0
      %s83 = sadd.s32 %s82, 1
      %s84 = scalar_select %p81, %s82, %s83
      %p87 = pneg %p81
      %p88 = scmp.eq.s32.totalorder %s34, 3
      %p89 = por %p87, %p88
      %p90 = scmp.ne.s32.totalorder %s82, %s85
      %p91 = scmp.eq.s32.totalorder %s34, 0
      %p92 = por %p90, %p91
      %p93 = scmp.ne.s32.totalorder %s82, %s85
      %p94 = scmp.eq.s32.totalorder %s39, 3
      %p95 = por %p93, %p94
      %p96 = scmp.ne.s32.totalorder %s85, %s86
      %p97 = scmp.eq.s32.totalorder %s39, 0
      %p98 = por %p96, %p97
      %p99 = scmp.ne.s32.totalorder %s85, %s86
      %p100 = scmp.eq.s32.totalorder %s40, 3
      %p101 = por %p99, %p100
      %p103 = scmp.ne.s32.totalorder %s86, %s102
      %p104 = scmp.eq.s32.totalorder %s40, 0
      %p105 = por %p103, %p104
      %s106 = ssub.s32 %s41, %s53
      %p107 = scmp.eq.s32.totalorder %s106, 0
      %s109 = sadd.s32 %s108, 1
      %s110 = scalar_select %p107, %s108, %s109
      %p113 = pneg %p107
      %p114 = scmp.eq.s32.totalorder %s34, 3
      %p115 = por %p113, %p114
      %p116 = scmp.ne.s32.totalorder %s108, %s111
      %p117 = scmp.eq.s32.totalorder %s34, 0
      %p118 = por %p116, %p117
      %p119 = scmp.ne.s32.totalorder %s108, %s111
      %p120 = scmp.eq.s32.totalorder %s39, 3
      %p121 = por %p119, %p120
      %p122 = scmp.ne.s32.totalorder %s111, %s112
      %p123 = scmp.eq.s32.totalorder %s39, 0
      %p124 = por %p122, %p123
      %p125 = scmp.ne.s32.totalorder %s111, %s112
      %p126 = scmp.eq.s32.totalorder %s40, 3
      %p127 = por %p125, %p126
      %p129 = scmp.ne.s32.totalorder %s112, %s128
      %p130 = scmp.eq.s32.totalorder %s40, 0
      %p131 = por %p129, %p130
      %s132 = ssub.s32 %s41, %s53
      %p133 = scmp.eq.s32.totalorder %s132, 0
      %s135 = sadd.s32 %s134, 1
      %s136 = scalar_select %p133, %s134, %s135
      %p139 = pneg %p133
      %p140 = scmp.eq.s32.totalorder %s34, 3
      %p141 = por %p139, %p140
      %p142 = scmp.ne.s32.totalorder %s134, %s137
      %p143 = scmp.eq.s32.totalorder %s34, 0
      %p144 = por %p142, %p143
      %p145 = scmp.ne.s32.totalorder %s134, %s137
      %p146 = scmp.eq.s32.totalorder %s39, 3
      %p147 = por %p145, %p146
      %p148 = scmp.ne.s32.totalorder %s137, %s138
      %p149 = scmp.eq.s32.totalorder %s39, 0
      %p150 = por %p148, %p149
      %p151 = scmp.ne.s32.totalorder %s137, %s138
      %p152 = scmp.eq.s32.totalorder %s40, 3
      %p153 = por %p151, %p152
      %p155 = scmp.ne.s32.totalorder %s138, %s154
      %p156 = scmp.eq.s32.totalorder %s40, 0
      %p157 = por %p155, %p156
      %s159 = sadd.s32 %s158, 1
      %p162 = scmp.eq.s32.totalorder %s34, 3
      %p163 = scmp.ne.s32.totalorder %s158, %s160
      %p164 = scmp.eq.s32.totalorder %s34, 0
      %p165 = por %p163, %p164
      %p166 = scmp.ne.s32.totalorder %s158, %s160
      %p167 = scmp.eq.s32.totalorder %s39, 3
      %p168 = por %p166, %p167
      %p169 = scmp.ne.s32.totalorder %s160, %s161
      %p170 = scmp.eq.s32.totalorder %s39, 0
      %p171 = por %p169, %p170
      %p172 = scmp.ne.s32.totalorder %s160, %s161
      %p173 = scmp.eq.s32.totalorder %s40, 3
      %p174 = por %p172, %p173
      %p176 = scmp.ne.s32.totalorder %s161, %s175
      %p177 = scmp.eq.s32.totalorder %s40, 0
      %p178 = por %p176, %p177
      %s180 = sadd.s32 %s179, 1
      %p183 = scmp.eq.s32.totalorder %s34, 3
      %p184 = scmp.ne.s32.totalorder %s179, %s181
      %p185 = scmp.eq.s32.totalorder %s34, 0
      %p186 = por %p184, %p185
      %p187 = scmp.ne.s32.totalorder %s179, %s181
      %p188 = scmp.eq.s32.totalorder %s39, 3
      %p189 = por %p187, %p188
      %p190 = scmp.ne.s32.totalorder %s181, %s182
      %p191 = scmp.eq.s32.totalorder %s39, 0
      %p192 = por %p190, %p191
      %p193 = scmp.ne.s32.totalorder %s181, %s182
      %p194 = scmp.eq.s32.totalorder %s40, 3
      %p195 = por %p193, %p194
      %p197 = scmp.ne.s32.totalorder %s182, %s196
      %p198 = scmp.eq.s32.totalorder %s40, 0
      %p199 = por %p197, %p198
      %s200 = ssub.s32 %s42, %s49
      %p201 = scmp.eq.s32.totalorder %s200, 0
      %s203 = sadd.s32 %s202, 1
      %s204 = scalar_select %p201, %s202, %s203
      %p207 = pneg %p201
      %p208 = scmp.eq.s32.totalorder %s34, 3
      %p209 = por %p207, %p208
      %p210 = scmp.ne.s32.totalorder %s202, %s205
      %p211 = scmp.eq.s32.totalorder %s34, 0
      %p212 = por %p210, %p211
      %p213 = scmp.ne.s32.totalorder %s202, %s205
      %p214 = scmp.eq.s32.totalorder %s39, 3
      %p215 = por %p213, %p214
      %p216 = scmp.ne.s32.totalorder %s205, %s206
      %p217 = scmp.eq.s32.totalorder %s39, 0
      %p218 = por %p216, %p217
      %p219 = scmp.ne.s32.totalorder %s205, %s206
      %p220 = scmp.eq.s32.totalorder %s40, 3
      %p221 = por %p219, %p220
      %p223 = scmp.ne.s32.totalorder %s206, %s222
      %p224 = scmp.eq.s32.totalorder %s40, 0
      %p225 = por %p223, %p224
      %s226 = ssub.s32 %s42, %s49
      %p227 = scmp.eq.s32.totalorder %s226, 0
      %s229 = sadd.s32 %s228, 1
      %s230 = scalar_select %p227, %s228, %s229
      %p233 = pneg %p227
      %p234 = scmp.eq.s32.totalorder %s34, 3
      %p235 = por %p233, %p234
      %p236 = scmp.ne.s32.totalorder %s228, %s231
      %p237 = scmp.eq.s32.totalorder %s34, 0
      %p238 = por %p236, %p237
      %p239 = scmp.ne.s32.totalorder %s228, %s231
      %p240 = scmp.eq.s32.totalorder %s39, 3
      %p241 = por %p239, %p240
      %p242 = scmp.ne.s32.totalorder %s231, %s232
      %p243 = scmp.eq.s32.totalorder %s39, 0
      %p244 = por %p242, %p243
      %p245 = scmp.ne.s32.totalorder %s231, %s232
      %p246 = scmp.eq.s32.totalorder %s40, 3
      %p247 = por %p245, %p246
      %p249 = scmp.ne.s32.totalorder %s232, %s248
      %p250 = scmp.eq.s32.totalorder %s40, 0
      %p251 = por %p249, %p250
      %s252 = ssub.s32 %s42, %s49
      %p253 = scmp.eq.s32.totalorder %s252, 0
      %s255 = sadd.s32 %s254, 1
      %s256 = scalar_select %p253, %s254, %s255
      %p259 = pneg %p253
      %p260 = scmp.eq.s32.totalorder %s34, 3
      %p261 = por %p259, %p260
      %p262 = scmp.ne.s32.totalorder %s254, %s257
      %p263 = scmp.eq.s32.totalorder %s34, 0
      %p264 = por %p262, %p263
      %p265 = scmp.ne.s32.totalorder %s254, %s257
      %p266 = scmp.eq.s32.totalorder %s39, 3
      %p267 = por %p265, %p266
      %p268 = scmp.ne.s32.totalorder %s257, %s258
      %p269 = scmp.eq.s32.totalorder %s39, 0
      %p270 = por %p268, %p269
      %p271 = scmp.ne.s32.totalorder %s257, %s258
      %p272 = scmp.eq.s32.totalorder %s40, 3
      %p273 = por %p271, %p272
      %p275 = scmp.ne.s32.totalorder %s258, %s274
      %p276 = scmp.eq.s32.totalorder %s40, 0
      %p277 = por %p275, %p276
      %s278 = ssub.s32 %s42, %s49
      %p279 = scmp.eq.s32.totalorder %s278, 0
      %s281 = sadd.s32 %s280, 1
      %s282 = scalar_select %p279, %s280, %s281
      %p285 = pneg %p279
      %p286 = scmp.eq.s32.totalorder %s34, 3
      %p287 = por %p285, %p286
      %p288 = scmp.ne.s32.totalorder %s280, %s283
      %p289 = scmp.eq.s32.totalorder %s34, 0
      %p290 = por %p288, %p289
      %p291 = scmp.ne.s32.totalorder %s280, %s283
      %p292 = scmp.eq.s32.totalorder %s39, 3
      %p293 = por %p291, %p292
      %p294 = scmp.ne.s32.totalorder %s283, %s284
      %p295 = scmp.eq.s32.totalorder %s39, 0
      %p296 = por %p294, %p295
      %p297 = scmp.ne.s32.totalorder %s283, %s284
      %p298 = scmp.eq.s32.totalorder %s40, 3
      %p299 = por %p297, %p298
      %p301 = scmp.ne.s32.totalorder %s284, %s300
      %p302 = scmp.eq.s32.totalorder %s40, 0
      %p303 = por %p301, %p302
      %s304 = ssub.s32 %s42, %s49
      %p305 = scmp.eq.s32.totalorder %s304, 0
      %s307 = sadd.s32 %s306, 1
      %s308 = scalar_select %p305, %s306, %s307
      %p311 = pneg %p305
      %p312 = scmp.eq.s32.totalorder %s34, 3
      %p313 = por %p311, %p312
      %p314 = scmp.ne.s32.totalorder %s306, %s309
      %p315 = scmp.eq.s32.totalorder %s34, 0
      %p316 = por %p314, %p315
      %p317 = scmp.ne.s32.totalorder %s306, %s309
      %p318 = scmp.eq.s32.totalorder %s39, 3
      %p319 = por %p317, %p318
      %p320 = scmp.ne.s32.totalorder %s309, %s310
      %p321 = scmp.eq.s32.totalorder %s39, 0
      %p322 = por %p320, %p321
      %p323 = scmp.ne.s32.totalorder %s309, %s310
      %p324 = scmp.eq.s32.totalorder %s40, 3
      %p325 = por %p323, %p324
      %p327 = scmp.ne.s32.totalorder %s310, %s326
      %p328 = scmp.eq.s32.totalorder %s40, 0
      %p329 = por %p327, %p328
      %s330 = ssub.s32 %s42, %s49
      %p331 = scmp.eq.s32.totalorder %s330, 0
      %s333 = sadd.s32 %s332, 1
      %s334 = scalar_select %p331, %s332, %s333
      %p337 = pneg %p331
      %p338 = scmp.eq.s32.totalorder %s34, 3
      %p339 = por %p337, %p338
      %p340 = scmp.ne.s32.totalorder %s332, %s335
      %p341 = scmp.eq.s32.totalorder %s34, 0
      %p342 = por %p340, %p341
      %p343 = scmp.ne.s32.totalorder %s332, %s335
      %p344 = scmp.eq.s32.totalorder %s39, 3
      %p345 = por %p343, %p344
      %p346 = scmp.ne.s32.totalorder %s335, %s336
      %p347 = scmp.eq.s32.totalorder %s39, 0
      %p348 = por %p346, %p347
      %p349 = scmp.ne.s32.totalorder %s335, %s336
      %p350 = scmp.eq.s32.totalorder %s40, 3
      %p351 = por %p349, %p350
      %p353 = scmp.ne.s32.totalorder %s336, %s352
      %p354 = scmp.eq.s32.totalorder %s40, 0
      %p355 = por %p353, %p354
      %s356 = ssub.s32 %s42, %s49
      %p357 = scmp.eq.s32.totalorder %s356, 0
      %s359 = sadd.s32 %s358, 1
      %s360 = scalar_select %p357, %s358, %s359
      %p363 = pneg %p357
      %p364 = scmp.eq.s32.totalorder %s34, 3
      %p365 = por %p363, %p364
      %p366 = scmp.ne.s32.totalorder %s358, %s361
      %p367 = scmp.eq.s32.totalorder %s34, 0
      %p368 = por %p366, %p367
      %p369 = scmp.ne.s32.totalorder %s358, %s361
      %p370 = scmp.eq.s32.totalorder %s39, 3
      %p371 = por %p369, %p370
      %p372 = scmp.ne.s32.totalorder %s361, %s362
      %p373 = scmp.eq.s32.totalorder %s39, 0
      %p374 = por %p372, %p373
      %p375 = scmp.ne.s32.totalorder %s361, %s362
      %p376 = scmp.eq.s32.totalorder %s40, 3
      %p377 = por %p375, %p376
      %p379 = scmp.ne.s32.totalorder %s362, %s378
      %p380 = scmp.eq.s32.totalorder %s40, 0
      %p381 = por %p379, %p380
      %s382 = ssub.s32 %s42, %s49
      %p383 = scmp.eq.s32.totalorder %s382, 0
      %s385 = sadd.s32 %s384, 1
      %s386 = scalar_select %p383, %s384, %s385
      %p389 = pneg %p383
      %p390 = scmp.eq.s32.totalorder %s34, 3
      %p391 = por %p389, %p390
      %p392 = scmp.ne.s32.totalorder %s384, %s387
      %p393 = scmp.eq.s32.totalorder %s34, 0
      %p394 = por %p392, %p393
      %p395 = scmp.ne.s32.totalorder %s384, %s387
      %p396 = scmp.eq.s32.totalorder %s39, 3
      %p397 = por %p395, %p396
      %p398 = scmp.ne.s32.totalorder %s387, %s388
      %p399 = scmp.eq.s32.totalorder %s39, 0
      %p400 = por %p398, %p399
      %p401 = scmp.ne.s32.totalorder %s387, %s388
      %p402 = scmp.eq.s32.totalorder %s40, 3
      %p403 = por %p401, %p402
      %p405 = scmp.ne.s32.totalorder %s388, %s404
      %p406 = scmp.eq.s32.totalorder %s40, 0
      %p407 = por %p405, %p406
      %s408 = ssub.s32 %s42, %s49
      %p409 = scmp.eq.s32.totalorder %s408, 0
      %s411 = sadd.s32 %s410, 1
      %s412 = scalar_select %p409, %s410, %s411
      %p415 = pneg %p409
      %p416 = scmp.eq.s32.totalorder %s34, 3
      %p417 = por %p415, %p416
      %p418 = scmp.ne.s32.totalorder %s410, %s413
      %p419 = scmp.eq.s32.totalorder %s34, 0
      %p420 = por %p418, %p419
      %p421 = scmp.ne.s32.totalorder %s410, %s413
      %p422 = scmp.eq.s32.totalorder %s39, 3
      %p423 = por %p421, %p422
      %p424 = scmp.ne.s32.totalorder %s413, %s414
      %p425 = scmp.eq.s32.totalorder %s39, 0
      %p426 = por %p424, %p425
      %p427 = scmp.ne.s32.totalorder %s413, %s414
      %p428 = scmp.eq.s32.totalorder %s40, 3
      %p429 = por %p427, %p428
      %p431 = scmp.ne.s32.totalorder %s414, %s430
      %p432 = scmp.eq.s32.totalorder %s40, 0
      %p433 = por %p431, %p432
      %s434 = ssub.s32 %s42, %s49
      %p435 = scmp.eq.s32.totalorder %s434, 0
      %s437 = sadd.s32 %s436, 1
      %s438 = scalar_select %p435, %s436, %s437
      %p441 = pneg %p435
      %p442 = scmp.eq.s32.totalorder %s34, 3
      %p443 = por %p441, %p442
      %p444 = scmp.ne.s32.totalorder %s436, %s439
      %p445 = scmp.eq.s32.totalorder %s34, 0
      %p446 = por %p444, %p445
      %p447 = scmp.ne.s32.totalorder %s436, %s439
      %p448 = scmp.eq.s32.totalorder %s39, 3
      %p449 = por %p447, %p448
      %p450 = scmp.ne.s32.totalorder %s439, %s440
      %p451 = scmp.eq.s32.totalorder %s39, 0
      %p452 = por %p450, %p451
      %p453 = scmp.ne.s32.totalorder %s439, %s440
      %p454 = scmp.eq.s32.totalorder %s40, 3
      %p455 = por %p453, %p454
      %p457 = scmp.ne.s32.totalorder %s440, %s456
      %p458 = scmp.eq.s32.totalorder %s40, 0
      %p459 = por %p457, %p458
      %s460 = ssub.s32 %s42, %s49
      %p461 = scmp.eq.s32.totalorder %s460, 0
      %s463 = sadd.s32 %s462, 1
      %s464 = scalar_select %p461, %s462, %s463
      %p467 = pneg %p461
      %p468 = scmp.eq.s32.totalorder %s34, 3
      %p469 = por %p467, %p468
      %p470 = scmp.ne.s32.totalorder %s462, %s465
      %p471 = scmp.eq.s32.totalorder %s34, 0
      %p472 = por %p470, %p471
      %p473 = scmp.ne.s32.totalorder %s462, %s465
      %p474 = scmp.eq.s32.totalorder %s39, 3
      %p475 = por %p473, %p474
      %p476 = scmp.ne.s32.totalorder %s465, %s466
      %p477 = scmp.eq.s32.totalorder %s39, 0
      %p478 = por %p476, %p477
      %p479 = scmp.ne.s32.totalorder %s465, %s466
      %p480 = scmp.eq.s32.totalorder %s40, 3
      %p481 = por %p479, %p480
      %p483 = scmp.ne.s32.totalorder %s466, %s482
      %p484 = scmp.eq.s32.totalorder %s40, 0
      %p485 = por %p483, %p484
      %s486 = ssub.s32 %s42, %s49
      %p487 = scmp.eq.s32.totalorder %s486, 0
      %s489 = sadd.s32 %s488, 1
      %s490 = scalar_select %p487, %s488, %s489
      %p493 = pneg %p487
      %p494 = scmp.eq.s32.totalorder %s34, 3
      %p495 = por %p493, %p494
      %p496 = scmp.ne.s32.totalorder %s488, %s491
      %p497 = scmp.eq.s32.totalorder %s34, 0
      %p498 = por %p496, %p497
      %p499 = scmp.ne.s32.totalorder %s488, %s491
      %p500 = scmp.eq.s32.totalorder %s39, 3
      %p501 = por %p499, %p500
      %p502 = scmp.ne.s32.totalorder %s491, %s492
      %p503 = scmp.eq.s32.totalorder %s39, 0
      %p504 = por %p502, %p503
      %p505 = scmp.ne.s32.totalorder %s491, %s492
      %p506 = scmp.eq.s32.totalorder %s40, 3
      %p507 = por %p505, %p506
      %p509 = scmp.ne.s32.totalorder %s492, %s508
      %p510 = scmp.eq.s32.totalorder %s40, 0
      %p511 = por %p509, %p510
      %s513 = sadd.s32 %s512, 1
      %p516 = scmp.eq.s32.totalorder %s34, 3
      %p517 = scmp.ne.s32.totalorder %s512, %s514
      %p518 = scmp.eq.s32.totalorder %s34, 0
      %p519 = por %p517, %p518
      %p520 = scmp.ne.s32.totalorder %s512, %s514
      %p521 = scmp.eq.s32.totalorder %s39, 3
      %p522 = por %p520, %p521
      %p523 = scmp.ne.s32.totalorder %s514, %s515
      %p524 = scmp.eq.s32.totalorder %s39, 0
      %p525 = por %p523, %p524
      %p526 = scmp.ne.s32.totalorder %s514, %s515
      %p527 = scmp.eq.s32.totalorder %s40, 3
      %p528 = por %p526, %p527
      %p530 = scmp.ne.s32.totalorder %s515, %s529
      %p531 = scmp.eq.s32.totalorder %s40, 0
      %p532 = por %p530, %p531
      %s534 = sadd.s32 %s533, 1
      %p537 = scmp.eq.s32.totalorder %s34, 3
      %p538 = scmp.ne.s32.totalorder %s533, %s535
      %p539 = scmp.eq.s32.totalorder %s34, 0
      %p540 = por %p538, %p539
      %p541 = scmp.ne.s32.totalorder %s533, %s535
      %p542 = scmp.eq.s32.totalorder %s39, 3
      %p543 = por %p541, %p542
      %p544 = scmp.ne.s32.totalorder %s535, %s536
      %p545 = scmp.eq.s32.totalorder %s39, 0
      %p546 = por %p544, %p545
      %p547 = scmp.ne.s32.totalorder %s535, %s536
      %p548 = scmp.eq.s32.totalorder %s40, 3
      %p549 = por %p547, %p548
      %p551 = scmp.ne.s32.totalorder %s536, %s550
      %p552 = scmp.eq.s32.totalorder %s40, 0
      %p553 = por %p551, %p552
      %s555 = sadd.s32 %s554, 1
      %p558 = scmp.eq.s32.totalorder %s34, 3
      %p559 = scmp.ne.s32.totalorder %s554, %s556
      %p560 = scmp.eq.s32.totalorder %s34, 0
      %p561 = por %p559, %p560
      %p562 = scmp.ne.s32.totalorder %s554, %s556
      %p563 = scmp.eq.s32.totalorder %s39, 3
      %p564 = por %p562, %p563
      %p565 = scmp.ne.s32.totalorder %s556, %s557
      %p566 = scmp.eq.s32.totalorder %s39, 0
      %p567 = por %p565, %p566
      %p568 = scmp.ne.s32.totalorder %s556, %s557
      %p569 = scmp.eq.s32.totalorder %s40, 3
      %p570 = por %p568, %p569
      %p572 = scmp.ne.s32.totalorder %s557, %s571
      %p573 = scmp.eq.s32.totalorder %s40, 0
      %p574 = por %p572, %p573
      %s576 = sadd.s32 %s575, 1
      %p579 = scmp.eq.s32.totalorder %s34, 3
      %p580 = scmp.ne.s32.totalorder %s575, %s577
      %p581 = scmp.eq.s32.totalorder %s34, 0
      %p582 = por %p580, %p581
      %p583 = scmp.ne.s32.totalorder %s575, %s577
      %p584 = scmp.eq.s32.totalorder %s39, 3
      %p585 = por %p583, %p584
      %p586 = scmp.ne.s32.totalorder %s577, %s578
      %p587 = scmp.eq.s32.totalorder %s39, 0
      %p588 = por %p586, %p587
      %p589 = scmp.ne.s32.totalorder %s577, %s578
      %p590 = scmp.eq.s32.totalorder %s40, 3
      %p591 = por %p589, %p590
      %p593 = scmp.ne.s32.totalorder %s578, %s592
      %p594 = scmp.eq.s32.totalorder %s40, 0
      %p595 = por %p593, %p594
      %s597 = sadd.s32 %s596, 1
      %p600 = scmp.eq.s32.totalorder %s34, 3
      %p601 = scmp.ne.s32.totalorder %s596, %s598
      %p602 = scmp.eq.s32.totalorder %s34, 0
      %p603 = por %p601, %p602
      %p604 = scmp.ne.s32.totalorder %s596, %s598
      %p605 = scmp.eq.s32.totalorder %s39, 3
      %p606 = por %p604, %p605
      %p607 = scmp.ne.s32.totalorder %s598, %s599
      %p608 = scmp.eq.s32.totalorder %s39, 0
      %p609 = por %p607, %p608
      %p610 = scmp.ne.s32.totalorder %s598, %s599
      %p611 = scmp.eq.s32.totalorder %s40, 3
      %p612 = por %p610, %p611
      %p614 = scmp.ne.s32.totalorder %s599, %s613
      %p615 = scmp.eq.s32.totalorder %s40, 0
      %p616 = por %p614, %p615
      %s618 = sadd.s32 %s617, 1
      %p621 = scmp.eq.s32.totalorder %s34, 3
      %p622 = scmp.ne.s32.totalorder %s617, %s619
      %p623 = scmp.eq.s32.totalorder %s34, 0
      %p624 = por %p622, %p623
      %p625 = scmp.ne.s32.totalorder %s617, %s619
      %p626 = scmp.eq.s32.totalorder %s39, 3
      %p627 = por %p625, %p626
      %p628 = scmp.ne.s32.totalorder %s619, %s620
      %p629 = scmp.eq.s32.totalorder %s39, 0
      %p630 = por %p628, %p629
      %p631 = scmp.ne.s32.totalorder %s619, %s620
      %p632 = scmp.eq.s32.totalorder %s40, 3
      %p633 = por %p631, %p632
      %p635 = scmp.ne.s32.totalorder %s620, %s634
      %p636 = scmp.eq.s32.totalorder %s40, 0
      %p637 = por %p635, %p636
      %s639 = sadd.s32 %s638, 1
      %p642 = scmp.eq.s32.totalorder %s34, 3
      %p643 = scmp.ne.s32.totalorder %s638, %s640
      %p644 = scmp.eq.s32.totalorder %s34, 0
      %p645 = por %p643, %p644
      %p646 = scmp.ne.s32.totalorder %s638, %s640
      %p647 = scmp.eq.s32.totalorder %s39, 3
      %p648 = por %p646, %p647
      %p649 = scmp.ne.s32.totalorder %s640, %s641
      %p650 = scmp.eq.s32.totalorder %s39, 0
      %p651 = por %p649, %p650
      %p652 = scmp.ne.s32.totalorder %s640, %s641
      %p653 = scmp.eq.s32.totalorder %s40, 3
      %p654 = por %p652, %p653
      %p656 = scmp.ne.s32.totalorder %s641, %s655
      %p657 = scmp.eq.s32.totalorder %s40, 0
      %p658 = por %p656, %p657
      %s659 = ssub.s32 %s41, %s53
      %p660 = scmp.eq.s32.totalorder %s659, 0
      %s662 = sadd.s32 %s661, 1
      %s663 = scalar_select %p660, %s661, %s662
      %p666 = pneg %p660
      %p667 = scmp.eq.s32.totalorder %s34, 3
      %p668 = por %p666, %p667
      %p669 = scmp.ne.s32.totalorder %s661, %s664
      %p670 = scmp.eq.s32.totalorder %s34, 0
      %p671 = por %p669, %p670
      %p672 = scmp.ne.s32.totalorder %s661, %s664
      %p673 = scmp.eq.s32.totalorder %s39, 3
      %p674 = por %p672, %p673
      %p675 = scmp.ne.s32.totalorder %s664, %s665
      %p676 = scmp.eq.s32.totalorder %s39, 0
      %p677 = por %p675, %p676
      %p678 = scmp.ne.s32.totalorder %s664, %s665
      %p679 = scmp.eq.s32.totalorder %s40, 3
      %p680 = por %p678, %p679
      %p682 = scmp.ne.s32.totalorder %s665, %s681
      %p683 = scmp.eq.s32.totalorder %s40, 0
      %p684 = por %p682, %p683
      %p685 = scmp.le.s32.totalorder 1, %s34
      %p686 = scmp.lt.s32.totalorder %s34, 5
      %p687 = pnand %p685, %p686
      %p688 = pneg %p687
      // Predicated region
      $region9: #{_lambda_.1} parent=5 // pred_check
        _
      $region10: #{_lambda_.1} parent=5 // pred_check_branch
        %690 = sbr.rel (%p687) target = $region12
      $region11: #{_lambda_.1} parent=5 // pred_region
        %s691 = ssub.s32 %s34, 1
        // Predicated region
        $region13: #{_lambda_.1} parent=11 // pred_check
          %p692 = pneg %p171
        $region14: #{_lambda_.1} parent=11 // pred_check_branch
          %694 = sbr.rel (%p692) target = $region16
        $region15: #{_lambda_.1} parent=11 // pred_region
          _
        $region16: #{_lambda_.1} parent=11 // pred_fallthru
          _
        // Predicated region
        $region17: #{_lambda_.1} parent=11 // pred_check
          %p695 = pneg %p192
        $region18: #{_lambda_.1} parent=11 // pred_check_branch
          %697 = sbr.rel (%p695) target = $region20
        $region19: #{_lambda_.1} parent=11 // pred_region
          _
        $region20: #{_lambda_.1} parent=11 // pred_fallthru
          _
        // Predicated region
        $region21: #{_lambda_.1} parent=11 // pred_check
          %p698 = pneg %p525
        $region22: #{_lambda_.1} parent=11 // pred_check_branch
          %700 = sbr.rel (%p698) target = $region24
        $region23: #{_lambda_.1} parent=11 // pred_region
          _
        $region24: #{_lambda_.1} parent=11 // pred_fallthru
          _
        // Predicated region
        $region25: #{_lambda_.1} parent=11 // pred_check
          %p701 = pneg %p546
        $region26: #{_lambda_.1} parent=11 // pred_check_branch
          %703 = sbr.rel (%p701) target = $region28
        $region27: #{_lambda_.1} parent=11 // pred_region
          _
        $region28: #{_lambda_.1} parent=11 // pred_fallthru
          _
        // Predicated region
        $region29: #{_lambda_.1} parent=11 // pred_check
          %p704 = pneg %p567
        $region30: #{_lambda_.1} parent=11 // pred_check_branch
          %706 = sbr.rel (%p704) target = $region32
        $region31: #{_lambda_.1} parent=11 // pred_region
          _
        $region32: #{_lambda_.1} parent=11 // pred_fallthru
          _
        // Predicated region
        $region33: #{_lambda_.1} parent=11 // pred_check
          %p707 = pneg %p588
        $region34: #{_lambda_.1} parent=11 // pred_check_branch
          %709 = sbr.rel (%p707) target = $region36
        $region35: #{_lambda_.1} parent=11 // pred_region
          _
        $region36: #{_lambda_.1} parent=11 // pred_fallthru
          _
        // Predicated region
        $region37: #{_lambda_.1} parent=11 // pred_check
          %p710 = pneg %p609
        $region38: #{_lambda_.1} parent=11 // pred_check_branch
          %712 = sbr.rel (%p710) target = $region40
        $region39: #{_lambda_.1} parent=11 // pred_region
          _
        $region40: #{_lambda_.1} parent=11 // pred_fallthru
          _
        // Predicated region
        $region41: #{_lambda_.1} parent=11 // pred_check
          %p713 = pneg %p630
        $region42: #{_lambda_.1} parent=11 // pred_check_branch
          %715 = sbr.rel (%p713) target = $region44
        $region43: #{_lambda_.1} parent=11 // pred_region
          _
        $region44: #{_lambda_.1} parent=11 // pred_fallthru
          _
        // Predicated region
        $region45: #{_lambda_.1} parent=11 // pred_check
          %p716 = pneg %p651
        $region46: #{_lambda_.1} parent=11 // pred_check_branch
          %718 = sbr.rel (%p716) target = $region48
        $region47: #{_lambda_.1} parent=11 // pred_region
          _
        $region48: #{_lambda_.1} parent=11 // pred_fallthru
          _
      $region12: #{_lambda_.1} parent=5 // pred_fallthru
        _
      %p719 = scmp.lt.s32.totalorder %s34, 4
      // Predicated region
      $region49: #{_lambda_.1} parent=5 // pred_check
        %p720 = pneg %p719
      $region50: #{_lambda_.1} parent=5 // pred_check_branch
        %722 = sbr.rel (%p720) target = $region52
      $region51: #{_lambda_.1} parent=5 // pred_region
        // Predicated region
        $region53: #{_lambda_.1} parent=51 // pred_check
          %p723 = pneg %p66
        $region54: #{_lambda_.1} parent=51 // pred_check_branch
          %725 = sbr.rel (%p723) target = $region56
        $region55: #{_lambda_.1} parent=51 // pred_region
          %p726 = scmp.lt.s32.totalorder %s41, 1
          %s727 = scalar_select %p726, %s41, 1
          %s728 = smul.addr %s727, 8
          %s729 = scalar_lea.vmem %s0, %s728
        $region56: #{_lambda_.1} parent=51 // pred_fallthru
          _
        // Predicated region
        $region57: #{_lambda_.1} parent=51 // pred_check
          %p730 = pneg %p92
        $region58: #{_lambda_.1} parent=51 // pred_check_branch
          %732 = sbr.rel (%p730) target = $region60
        $region59: #{_lambda_.1} parent=51 // pred_region
          %p733 = scmp.lt.s32.totalorder %s41, 1
          %s734 = scalar_select %p733, %s41, 1
          %s735 = scalar_lea.vmem %s1, %s734
        $region60: #{_lambda_.1} parent=51 // pred_fallthru
          _
        // Predicated region
        $region61: #{_lambda_.1} parent=51 // pred_check
          %p736 = pneg %p118
        $region62: #{_lambda_.1} parent=51 // pred_check_branch
          %738 = sbr.rel (%p736) target = $region64
        $region63: #{_lambda_.1} parent=51 // pred_region
          %p739 = scmp.lt.s32.totalorder %s41, 1
          %s740 = scalar_select %p739, %s41, 1
          %s741 = scalar_lea.vmem %s2, %s740
        $region64: #{_lambda_.1} parent=51 // pred_fallthru
          _
        // Predicated region
        $region65: #{_lambda_.1} parent=51 // pred_check
          %p742 = pneg %p144
        $region66: #{_lambda_.1} parent=51 // pred_check_branch
          %744 = sbr.rel (%p742) target = $region68
        $region67: #{_lambda_.1} parent=51 // pred_region
          %p745 = scmp.lt.s32.totalorder %s41, 1
          %s746 = scalar_select %p745, %s41, 1
          %s747 = smul.addr %s746, 2
          %s748 = scalar_lea.vmem %s3, %s747
        $region68: #{_lambda_.1} parent=51 // pred_fallthru
          _
        // Predicated region
        $region69: #{_lambda_.1} parent=51 // pred_check
          %p749 = pneg %p212
        $region70: #{_lambda_.1} parent=51 // pred_check_branch
          %751 = sbr.rel (%p749) target = $region72
        $region71: #{_lambda_.1} parent=51 // pred_region
          %p752 = scmp.lt.s32.totalorder %s42, 1
          %s753 = scalar_select %p752, %s42, 1
          %s754 = smul.addr %s753, 4
          %s755 = smul.addr %s754, 4
          %s756 = scalar_lea.vmem %s6, %s755
        $region72: #{_lambda_.1} parent=51 // pred_fallthru
          _
        // Predicated region
        $region73: #{_lambda_.1} parent=51 // pred_check
          %p757 = pneg %p238
        $region74: #{_lambda_.1} parent=51 // pred_check_branch
          %759 = sbr.rel (%p757) target = $region76
        $region75: #{_lambda_.1} parent=51 // pred_region
          %p760 = scmp.lt.s32.totalorder %s42, 1
          %s761 = scalar_select %p760, %s42, 1
          %s762 = scalar_lea.vmem %s7, %s761
        $region76: #{_lambda_.1} parent=51 // pred_fallthru
          _
        // Predicated region
        $region77: #{_lambda_.1} parent=51 // pred_check
          %p763 = pneg %p264
        $region78: #{_lambda_.1} parent=51 // pred_check_branch
          %765 = sbr.rel (%p763) target = $region80
        $region79: #{_lambda_.1} parent=51 // pred_region
          %p766 = scmp.lt.s32.totalorder %s42, 1
          %s767 = scalar_select %p766, %s42, 1
          %s768 = smul.addr %s767, 4
          %s769 = smul.addr %s768, 4
          %s770 = scalar_lea.vmem %s8, %s769
        $region80: #{_lambda_.1} parent=51 // pred_fallthru
          _
        // Predicated region
        $region81: #{_lambda_.1} parent=51 // pred_check
          %p771 = pneg %p290
        $region82: #{_lambda_.1} parent=51 // pred_check_branch
          %773 = sbr.rel (%p771) target = $region84
        $region83: #{_lambda_.1} parent=51 // pred_region
          %p774 = scmp.lt.s32.totalorder %s42, 1
          %s775 = scalar_select %p774, %s42, 1
          %s776 = scalar_lea.vmem %s9, %s775
        $region84: #{_lambda_.1} parent=51 // pred_fallthru
          _
        // Predicated region
        $region85: #{_lambda_.1} parent=51 // pred_check
          %p777 = pneg %p316
        $region86: #{_lambda_.1} parent=51 // pred_check_branch
          %779 = sbr.rel (%p777) target = $region88
        $region87: #{_lambda_.1} parent=51 // pred_region
          %p780 = scmp.lt.s32.totalorder %s42, 1
          %s781 = scalar_select %p780, %s42, 1
          %s782 = scalar_lea.vmem %s10, %s781
        $region88: #{_lambda_.1} parent=51 // pred_fallthru
          _
        // Predicated region
        $region89: #{_lambda_.1} parent=51 // pred_check
          %p783 = pneg %p342
        $region90: #{_lambda_.1} parent=51 // pred_check_branch
          %785 = sbr.rel (%p783) target = $region92
        $region91: #{_lambda_.1} parent=51 // pred_region
          %p786 = scmp.lt.s32.totalorder %s42, 1
          %s787 = scalar_select %p786, %s42, 1
          %s788 = scalar_lea.vmem %s11, %s787
        $region92: #{_lambda_.1} parent=51 // pred_fallthru
          _
        // Predicated region
        $region93: #{_lambda_.1} parent=51 // pred_check
          %p789 = pneg %p368
        $region94: #{_lambda_.1} parent=51 // pred_check_branch
          %791 = sbr.rel (%p789) target = $region96
        $region95: #{_lambda_.1} parent=51 // pred_region
          %p792 = scmp.lt.s32.totalorder %s42, 1
          %s793 = scalar_select %p792, %s42, 1
          %s794 = smul.addr %s793, 4
          %s795 = smul.addr %s794, 4
          %s796 = scalar_lea.vmem %s12, %s795
        $region96: #{_lambda_.1} parent=51 // pred_fallthru
          _
        // Predicated region
        $region97: #{_lambda_.1} parent=51 // pred_check
          %p797 = pneg %p394
        $region98: #{_lambda_.1} parent=51 // pred_check_branch
          %799 = sbr.rel (%p797) target = $region100
        $region99: #{_lambda_.1} parent=51 // pred_region
          %p800 = scmp.lt.s32.totalorder %s42, 1
          %s801 = scalar_select %p800, %s42, 1
          %s802 = scalar_lea.vmem %s13, %s801
        $region100: #{_lambda_.1} parent=51 // pred_fallthru
          _
        // Predicated region
        $region101: #{_lambda_.1} parent=51 // pred_check
          %p803 = pneg %p420
        $region102: #{_lambda_.1} parent=51 // pred_check_branch
          %805 = sbr.rel (%p803) target = $region104
        $region103: #{_lambda_.1} parent=51 // pred_region
          %p806 = scmp.lt.s32.totalorder %s42, 1
          %s807 = scalar_select %p806, %s42, 1
          %s808 = smul.addr %s807, 8
          %s809 = smul.addr %s808, 4
          %s810 = scalar_lea.vmem %s14, %s809
        $region104: #{_lambda_.1} parent=51 // pred_fallthru
          _
        // Predicated region
        $region105: #{_lambda_.1} parent=51 // pred_check
          %p811 = pneg %p446
        $region106: #{_lambda_.1} parent=51 // pred_check_branch
          %813 = sbr.rel (%p811) target = $region108
        $region107: #{_lambda_.1} parent=51 // pred_region
          %p814 = scmp.lt.s32.totalorder %s42, 1
          %s815 = scalar_select %p814, %s42, 1
          %s816 = scalar_lea.vmem %s15, %s815
        $region108: #{_lambda_.1} parent=51 // pred_fallthru
          _
        // Predicated region
        $region109: #{_lambda_.1} parent=51 // pred_check
          %p817 = pneg %p472
        $region110: #{_lambda_.1} parent=51 // pred_check_branch
          %819 = sbr.rel (%p817) target = $region112
        $region111: #{_lambda_.1} parent=51 // pred_region
          %p820 = scmp.lt.s32.totalorder %s42, 1
          %s821 = scalar_select %p820, %s42, 1
          %s822 = scalar_lea.vmem %s16, %s821
        $region112: #{_lambda_.1} parent=51 // pred_fallthru
          _
        // Predicated region
        $region113: #{_lambda_.1} parent=51 // pred_check
          %p823 = pneg %p498
        $region114: #{_lambda_.1} parent=51 // pred_check_branch
          %825 = sbr.rel (%p823) target = $region116
        $region115: #{_lambda_.1} parent=51 // pred_region
          %p826 = scmp.lt.s32.totalorder %s42, 1
          %s827 = scalar_select %p826, %s42, 1
          %s828 = scalar_lea.vmem %s17, %s827
        $region116: #{_lambda_.1} parent=51 // pred_fallthru
          _
      $region52: #{_lambda_.1} parent=5 // pred_fallthru
        _
      %p829 = scmp.le.s32.totalorder 1, %s34
      %p830 = scmp.lt.s32.totalorder %s34, 5
      %p831 = pnand %p829, %p830
      %p832 = pneg %p831
      // Predicated region
      $region117: #{_lambda_.1} parent=5 // pred_check
        _
      $region118: #{_lambda_.1} parent=5 // pred_check_branch
        %834 = sbr.rel (%p831) target = $region120
      $region119: #{_lambda_.1} parent=5 // pred_region
        %s835 = ssub.s32 %s34, 1
        %p836 = scmp.lt.s32.totalorder %s43, 1
        %s837 = scalar_select %p836, %s43, 1
        %s838 = smul.addr %s837, 8
        %s839 = scalar_lea.vmem %s0, %s838
        %p840 = pneg %p72
        %p841 = pneg %p69
        %p842 = scmp.lt.s32.totalorder %s43, 1
        %s843 = scalar_select %p842, %s43, 1
        %s844 = scalar_lea.vmem %s1, %s843
        %p845 = pneg %p98
        %p846 = pneg %p95
        %p847 = scmp.lt.s32.totalorder %s43, 1
        %s848 = scalar_select %p847, %s43, 1
        %s849 = scalar_lea.vmem %s2, %s848
        %p850 = pneg %p124
        %p851 = pneg %p121
        %p852 = scmp.lt.s32.totalorder %s43, 1
        %s853 = scalar_select %p852, %s43, 1
        %s854 = smul.addr %s853, 2
        %s855 = scalar_lea.vmem %s3, %s854
        %p856 = pneg %p150
        %p857 = pneg %p147
        %p858 = pneg %p171
        %p859 = pneg %p168
        %p860 = pneg %p192
        %p861 = pneg %p189
        %p862 = scmp.lt.s32.totalorder %s44, 1
        %s863 = scalar_select %p862, %s44, 1
        %s864 = smul.addr %s863, 4
        %s865 = smul.addr %s864, 4
        %s866 = scalar_lea.vmem %s6, %s865
        %p867 = pneg %p218
        %p868 = pneg %p215
        %p869 = scmp.lt.s32.totalorder %s44, 1
        %s870 = scalar_select %p869, %s44, 1
        %s871 = scalar_lea.vmem %s7, %s870
        %p872 = pneg %p244
        %p873 = pneg %p241
        %p874 = scmp.lt.s32.totalorder %s44, 1
        %s875 = scalar_select %p874, %s44, 1
        %s876 = smul.addr %s875, 4
        %s877 = smul.addr %s876, 4
        %s878 = scalar_lea.vmem %s8, %s877
        %p879 = pneg %p270
        %p880 = pneg %p267
        %p881 = scmp.lt.s32.totalorder %s44, 1
        %s882 = scalar_select %p881, %s44, 1
        %s883 = scalar_lea.vmem %s9, %s882
        %p884 = pneg %p296
        %p885 = pneg %p293
        %p886 = scmp.lt.s32.totalorder %s44, 1
        %s887 = scalar_select %p886, %s44, 1
        %s888 = scalar_lea.vmem %s10, %s887
        %p889 = pneg %p322
        %p890 = pneg %p319
        %p891 = scmp.lt.s32.totalorder %s44, 1
        %s892 = scalar_select %p891, %s44, 1
        %s893 = scalar_lea.vmem %s11, %s892
        %p894 = pneg %p348
        %p895 = pneg %p345
        %p896 = scmp.lt.s32.totalorder %s44, 1
        %s897 = scalar_select %p896, %s44, 1
        %s898 = smul.addr %s897, 4
        %s899 = smul.addr %s898, 4
        %s900 = scalar_lea.vmem %s12, %s899
        %p901 = pneg %p374
        %p902 = pneg %p371
        %p903 = scmp.lt.s32.totalorder %s44, 1
        %s904 = scalar_select %p903, %s44, 1
        %s905 = scalar_lea.vmem %s13, %s904
        %p906 = pneg %p400
        %p907 = pneg %p397
        %p908 = scmp.lt.s32.totalorder %s44, 1
        %s909 = scalar_select %p908, %s44, 1
        %s910 = smul.addr %s909, 8
        %s911 = smul.addr %s910, 4
        %s912 = scalar_lea.vmem %s14, %s911
        %p913 = pneg %p426
        %p914 = pneg %p423
        %p915 = scmp.lt.s32.totalorder %s44, 1
        %s916 = scalar_select %p915, %s44, 1
        %s917 = scalar_lea.vmem %s15, %s916
        %p918 = pneg %p452
        %p919 = pneg %p449
        %p920 = scmp.lt.s32.totalorder %s44, 1
        %s921 = scalar_select %p920, %s44, 1
        %s922 = scalar_lea.vmem %s16, %s921
        %p923 = pneg %p478
        %p924 = pneg %p475
        %p925 = scmp.lt.s32.totalorder %s44, 1
        %s926 = scalar_select %p925, %s44, 1
        %s927 = scalar_lea.vmem %s17, %s926
        %p928 = pneg %p504
        %p929 = pneg %p501
        %p930 = pneg %p525
        %p931 = pneg %p522
        %p932 = pneg %p546
        %p933 = pneg %p543
        %p934 = pneg %p567
        %p935 = pneg %p564
        %p936 = pneg %p588
        %p937 = pneg %p585
        %p938 = pneg %p609
        %p939 = pneg %p606
        %p940 = pneg %p630
        %p941 = pneg %p627
        %p942 = pneg %p651
        %p943 = pneg %p648
        %p944 = pneg %p677
        %p945 = pneg %p674
        %s946 = sand.u32 %s664, 1
        %s947 = scalar_lea.sflag [#allocation4], %s946
        %s948 = sand.u32 %s664, 1
        %s949 = scalar_lea.vmem [#allocation3], %s948
        %p950 = scmp.lt.s32.totalorder %s43, 1
        %s951 = scalar_select %p950, %s43, 1
        %s952 = smul.addr %s951, 8
        %s953 = scalar_lea.vmem %s0, %s952
        %p954 = scmp.lt.s32.totalorder %s43, 1
        %s955 = scalar_select %p954, %s43, 1
        %s956 = scalar_lea.vmem %s1, %s955
        %p957 = scmp.lt.s32.totalorder %s43, 1
        %s958 = scalar_select %p957, %s43, 1
        %s959 = scalar_lea.vmem %s2, %s958
        %p960 = scmp.lt.s32.totalorder %s43, 1
        %s961 = scalar_select %p960, %s43, 1
        %s962 = smul.addr %s961, 2
        %s963 = scalar_lea.vmem %s3, %s962
        %p964 = scmp.lt.s32.totalorder %s44, 1
        %s965 = scalar_select %p964, %s44, 1
        %s966 = smul.addr %s965, 4
        %s967 = smul.addr %s966, 4
        %s968 = scalar_lea.vmem %s6, %s967
        %p969 = scmp.lt.s32.totalorder %s44, 1
        %s970 = scalar_select %p969, %s44, 1
        %s971 = scalar_lea.vmem %s7, %s970
        %p972 = scmp.lt.s32.totalorder %s44, 1
        %s973 = scalar_select %p972, %s44, 1
        %s974 = smul.addr %s973, 4
        %s975 = smul.addr %s974, 4
        %s976 = scalar_lea.vmem %s8, %s975
        %p977 = scmp.lt.s32.totalorder %s44, 1
        %s978 = scalar_select %p977, %s44, 1
        %s979 = scalar_lea.vmem %s9, %s978
        %p980 = scmp.lt.s32.totalorder %s44, 1
        %s981 = scalar_select %p980, %s44, 1
        %s982 = scalar_lea.vmem %s10, %s981
        %p983 = scmp.lt.s32.totalorder %s44, 1
        %s984 = scalar_select %p983, %s44, 1
        %s985 = scalar_lea.vmem %s11, %s984
        %p986 = scmp.lt.s32.totalorder %s44, 1
        %s987 = scalar_select %p986, %s44, 1
        %s988 = smul.addr %s987, 4
        %s989 = smul.addr %s988, 4
        %s990 = scalar_lea.vmem %s12, %s989
        %p991 = scmp.lt.s32.totalorder %s44, 1
        %s992 = scalar_select %p991, %s44, 1
        %s993 = scalar_lea.vmem %s13, %s992
        %p994 = scmp.lt.s32.totalorder %s44, 1
        %s995 = scalar_select %p994, %s44, 1
        %s996 = smul.addr %s995, 8
        %s997 = smul.addr %s996, 4
        %s998 = scalar_lea.vmem %s14, %s997
        %p999 = scmp.lt.s32.totalorder %s44, 1
        %s1000 = scalar_select %p999, %s44, 1
        %s1001 = scalar_lea.vmem %s15, %s1000
        %p1002 = scmp.lt.s32.totalorder %s44, 1
        %s1003 = scalar_select %p1002, %s44, 1
        %s1004 = scalar_lea.vmem %s16, %s1003
        %p1005 = scmp.lt.s32.totalorder %s44, 1
        %s1006 = scalar_select %p1005, %s44, 1
        %s1007 = scalar_lea.vmem %s17, %s1006
        %p1009 = scmp.eq.s32.totalorder %s44, 0
        // Predicated region
        $region121: #{_lambda_.1} parent=119 // pred_check
          %p1010 = pneg %p1009
        $region122: #{_lambda_.1} parent=119 // pred_check_branch
          %1012 = sbr.rel (%p1010) target = $region124
        $region123: #{_lambda_.1} parent=119 // pred_region
          %v1013 = vld [vmem:[%s953] sm:$0xff]
          %v1014 = vld [vmem:[%s4] sm:$0x1]
          %v1015 = vld [vmem:[%s5] sm:$0x1]
          %vm1016 = vcmask 261120
          %v1017 = vsel %vm1016, %v1013, 0.0
          %1018 = vadd.xlane.f32.xlu0 %v1017
          %v1019 = vpop.xlane.xlu0 %1018
          %v1020 = vrcp.pop 32.0
          %v1021 = vmul.f32 32.0, %v1020
          %v1022 = vsub.f32 1.0, %v1021
          %v1023 = vmul.f32 %v1020, %v1022
          %v1024 = vadd.f32 %v1020, %v1023
          %vm1025 = vweird.f32 %v1020
          %v1026 = vsel %vm1025, %v1020, %v1024
          %v1027 = vmul.f32 %v1019, %v1026
          %v1028 = vsub.f32 %v1013, %v1027
          %v1029 = vmul.f32 %v1028, %v1028
          %v1030 = vsel %vm1016, %v1029, 0.0
          %1031 = vadd.xlane.f32.xlu0 %v1030
          %v1032 = vpop.xlane.xlu0 %1031
          %v1033 = vmul.f32 %v1032, %v1026
          %v1034 = vadd.f32 %v1033, 1e-12
          %v1035 = vrsqrt.pop %v1034
          %v1036 = vmul.f32 %v1035, %v1034
          %v1037 = vmul.f32 %v1036, %v1035
          %v1038 = vmul.f32 0.5, %v1037
          %v1039 = vsub.f32 1.5, %v1038
          %v1040 = vmul.f32 %v1035, %v1039
          %vm1041 = vweird.f32 %v1034
          %vm1042 = vweird.f32 %v1035
          %vm1043 = vmor %vm1041, %vm1042
          %v1044 = vsel %vm1043, %v1035, %v1040
          %v1045 = vmul.f32 %v1028, %v1044
          %v1047 = vperm.slane %v1014, 0
          %v1049 = vmul.f32 %v1045, %v1047
          %v1051 = vperm.slane %v1015, 0
          %v1053 = vadd.f32 %v1049, %v1051
          %1054 = vst.msk [vmem:[#allocation2] sm:$0xff] %vm1016, %v1053
        $region124: #{_lambda_.1} parent=119 // pred_fallthru
          _
        %v1055 = vld [vmem:[#allocation2] sm:$0xff]
        %v1056 = vpack.c.bf16 %v1055, %v1055
        %v1057 = vld [vmem:[%s968] sm:$0xf]
        %v1058 = vld [vmem:[%s968 + $0x4] sm:$0xf]
        %v1059 = vld [vmem:[%s968 + $0x8] sm:$0xf]
        %v1060 = vld [vmem:[%s968 + $0xc] sm:$0xf]
        %v1061 = vld [vmem:[%s971] sm:$0x1]
        %v1063 = vperm.slane %v1061, 0
        %v1069 = vunpack.c.l.b16 %v1057
        %v1070 = vunpack.c.l.b16 %v1058
        %v1071 = vunpack.c.l.b16 %v1059
        %v1072 = vunpack.c.l.b16 %v1060
        %v1073 = vpack.c.b16 %v1070, %v1069
        %v1074 = vpack.c.b16 %v1072, %v1071
        %vm1077 = vcmask 261120
        %v1079 = vsel %vm1077, %v1056, 0
        %1081 = vmatpush.bf16.msra.mxu0 0
        %1082 = vmatpush.bf16.msra.mxu0 0
        %1083 = vmatpush.bf16.msra.mxu0 0
        %1084 = vmatpush.bf16.msra.mxu0 0
        %1085 = vmatpush.bf16.msra.mxu0 0
        %1086 = vmatpush.bf16.msra.mxu0 0
        %1087 = vmatpush.bf16.msra.mxu0 %v1074
        %1088 = vmatpush.bf16.msra.mxu0 %v1073
        %1089 = vmatmul.bf16.gmra.mxu0 %v1079
        %v1090 = vpop.f32.mrf.mxu0
        %v1091 = vadd.f32 %v1063, %v1090
        %v1092 = vpop.f32.mrf.mxu0
        %1093 = vdwg.mxu0
        %v1094 = vld [vmem:[%s956] sm:$0x1]
        %v1095 = vpack.c.bf16 %v1091, %v1091
        %1097 = vrot.lane.b32.xlu0 %v1095, 96
        %v1098 = vpop.permute.xlu0 %1097
        %vm1099 = vcmask 130048
        %v1101 = vsel %vm1099, %v1095, 0
        %v1104 = vsel %vm1099, %v1098, 0
        %1106 = vmatpush.bf16.xpose.msra.mxu0 0
        %1107 = vmatpush.bf16.xpose.msra.mxu0 0
        %1108 = vmatpush.bf16.xpose.msra.mxu0 0
        %1109 = vmatpush.bf16.xpose.msra.mxu0 0
        %1110 = vmatpush.bf16.xpose.msra.mxu0 0
        %1111 = vmatpush.bf16.xpose.msra.mxu0 0
        %1112 = vmatpush.bf16.xpose.msra.mxu0 0
        %1113 = vmatpush.bf16.xpose.msra.mxu0 %v1104
        %1114 = vmatmul.bf16.gmra.mxu0 %v1101
        %v1115 = vpop.f32.mrf.mxu0
        %v1116 = vadd.f32 0.0, %v1115
        %v1117 = vpop.f32.mrf.mxu0
        %1118 = vdwg.mxu0
        %v1119 = vmul.f32 %v1116, 0.25
        %v1121 = vperm.slane %v1094, 0
        %v1123 = vadd.f32 %v1119, %v1121
        %vm1124 = vcmask 64512
        %v1125 = vsel %vm1124, %v1123, -inf
        %1126 = vmax.xlane.f32.xlu0 %v1125
        %v1127 = vpop.xlane.xlu0 %1126
        %v1128 = vsub.f32 %v1123, %v1127
        %v1129 = vmul.f32 %v1128, 1.442695
        %v1130 = vpow.pop %v1129
        %v1131 = vsel %vm1124, %v1130, 0.0
        %1132 = vadd.xlane.f32.xlu0 %v1131
        %v1133 = vpop.xlane.xlu0 %1132
        %v1134 = vrcp.pop %v1133
        %v1135 = vmul.f32 %v1130, %v1134
        %v1136 = vpack.c.bf16 %v1135, %v1135
        %1137 = vrot.lane.b32.xlu0 %v1095, 64
        %v1138 = vpop.permute.xlu0 %1137
        %v1140 = vsel %vm1124, %v1136, 0
        %vm1142 = vcmask 1043456
        %v1144 = vsel %vm1142, %v1138, 0
        %1146 = vmatpush.bf16.msra.mxu0 0
        %1147 = vmatpush.bf16.msra.mxu0 0
        %1148 = vmatpush.bf16.msra.mxu0 0
        %1149 = vmatpush.bf16.msra.mxu0 0
        %1150 = vmatpush.bf16.msra.mxu0 0
        %1151 = vmatpush.bf16.msra.mxu0 0
        %1152 = vmatpush.bf16.msra.mxu0 0
        %1153 = vmatpush.bf16.msra.mxu0 %v1144
        %1154 = vmatmul.bf16.gmra.mxu0 %v1140
        %v1155 = vpop.f32.mrf.mxu0
        %v1156 = vadd.f32 0.0, %v1155
        %v1157 = vpop.f32.mrf.mxu0
        %1158 = vdwg.mxu0
        %v1159 = vpack.c.bf16 %v1156, %v1156
        %v1160 = vld [vmem:[%s976] sm:$0xf]
        %v1161 = vld [vmem:[%s976 + $0x4] sm:$0xf]
        %1162 = vrot.lane.b32.xlu0 %v1095, 112
        %v1163 = vpop.permute.xlu0 %1162
        %1164 = vrot.lane.b32.xlu0 %v1095, 80
        %v1165 = vpop.permute.xlu0 %1164
        %v1167 = vsel %vm1099, %v1163, 0
        %v1170 = vsel %vm1099, %v1165, 0
        %1172 = vmatpush.bf16.xpose.msra.mxu0 0
        %1173 = vmatpush.bf16.xpose.msra.mxu0 0
        %1174 = vmatpush.bf16.xpose.msra.mxu0 0
        %1175 = vmatpush.bf16.xpose.msra.mxu0 0
        %1176 = vmatpush.bf16.xpose.msra.mxu0 0
        %1177 = vmatpush.bf16.xpose.msra.mxu0 0
        %1178 = vmatpush.bf16.xpose.msra.mxu0 0
        %1179 = vmatpush.bf16.xpose.msra.mxu0 %v1170
        %1180 = vmatmul.bf16.gmra.mxu0 %v1167
        %v1181 = vpop.f32.mrf.mxu0
        %v1182 = vadd.f32 0.0, %v1181
        %v1183 = vpop.f32.mrf.mxu0
        %1184 = vdwg.mxu0
        %v1185 = vmul.f32 %v1182, 0.25
        %v1186 = vadd.f32 %v1185, %v1121
        %v1187 = vsel %vm1124, %v1186, -inf
        %1188 = vmax.xlane.f32.xlu0 %v1187
        %v1189 = vpop.xlane.xlu0 %1188
        %v1190 = vsub.f32 %v1186, %v1189
        %v1191 = vmul.f32 %v1190, 1.442695
        %v1192 = vpow.pop %v1191
        %v1193 = vsel %vm1124, %v1192, 0.0
        %1194 = vadd.xlane.f32.xlu0 %v1193
        %v1195 = vpop.xlane.xlu0 %1194
        %v1196 = vrcp.pop %v1195
        %v1197 = vmul.f32 %v1192, %v1196
        %v1198 = vpack.c.bf16 %v1197, %v1197
        %1199 = vrot.lane.b32.xlu0 %v1095, 48
        %v1200 = vpop.permute.xlu0 %1199
        %v1202 = vsel %vm1124, %v1198, 0
        %v1205 = vsel %vm1142, %v1200, 0
        %1207 = vmatpush.bf16.msra.mxu0 0
        %1208 = vmatpush.bf16.msra.mxu0 0
        %1209 = vmatpush.bf16.msra.mxu0 0
        %1210 = vmatpush.bf16.msra.mxu0 0
        %1211 = vmatpush.bf16.msra.mxu0 0
        %1212 = vmatpush.bf16.msra.mxu0 0
        %1213 = vmatpush.bf16.msra.mxu0 0
        %1214 = vmatpush.bf16.msra.mxu0 %v1205
        %1215 = vmatmul.bf16.gmra.mxu0 %v1202
        %v1216 = vpop.f32.mrf.mxu0
        %v1217 = vadd.f32 0.0, %v1216
        %v1218 = vpop.f32.mrf.mxu0
        %1219 = vdwg.mxu0
        %v1220 = vpack.c.bf16 %v1217, %v1217
        %v1221 = vld [vmem:[%s976 + $0x8] sm:$0xf]
        %v1222 = vld [vmem:[%s976 + $0xc] sm:$0xf]
        %v1225 = vunpack.c.l.b16 %v1221
        %v1226 = vunpack.c.l.b16 %v1222
        %v1227 = vpack.c.b16 %v1226, %v1225
        %v1230 = vsel %vm1099, %v1220, 0
        %1232 = vmatpush.bf16.msra.mxu0 0
        %1233 = vmatpush.bf16.msra.mxu0 0
        %1234 = vmatpush.bf16.msra.mxu0 0
        %1235 = vmatpush.bf16.msra.mxu0 0
        %1236 = vmatpush.bf16.msra.mxu0 0
        %1237 = vmatpush.bf16.msra.mxu0 0
        %1238 = vmatpush.bf16.msra.mxu0 0
        %1239 = vmatpush.bf16.msra.mxu0 %v1227
        %1240 = vmatmul.bf16.gmra.mxu0 %v1230
        %v1241 = vpop.f32.mrf.mxu0
        %v1242 = vadd.f32 0.0, %v1241
        %v1243 = vpop.f32.mrf.mxu0
        %1244 = vdwg.mxu0
        %v1247 = vunpack.c.l.b16 %v1160
        %v1248 = vunpack.c.l.b16 %v1161
        %v1249 = vpack.c.b16 %v1248, %v1247
        %v1252 = vsel %vm1099, %v1159, 0
        %1254 = vmatpush.bf16.msra.mxu0 0
        %1255 = vmatpush.bf16.msra.mxu0 0
        %1256 = vmatpush.bf16.msra.mxu0 0
        %1257 = vmatpush.bf16.msra.mxu0 0
        %1258 = vmatpush.bf16.msra.mxu0 0
        %1259 = vmatpush.bf16.msra.mxu0 0
        %1260 = vmatpush.bf16.msra.mxu0 0
        %1261 = vmatpush.bf16.msra.mxu0 %v1249
        %1262 = vmatmul.bf16.gmra.mxu0 %v1252
        %v1263 = vpop.f32.mrf.mxu0
        %v1264 = vadd.f32 %v1242, %v1263
        %v1265 = vpop.f32.mrf.mxu0
        %1266 = vdwg.mxu0
        %v1267 = vld [vmem:[%s979] sm:$0x1]
        %v1269 = vperm.slane %v1267, 0
        %v1271 = vadd.f32 %v1264, %v1269
        %v1272 = vadd.f32 %v1055, %v1271
        %v1273 = vld [vmem:[%s982] sm:$0x1]
        %v1274 = vld [vmem:[%s985] sm:$0x1]
        %v1275 = vsel %vm1077, %v1272, 0.0
        %1276 = vadd.xlane.f32.xlu0 %v1275
        %v1277 = vpop.xlane.xlu0 %1276
        %v1278 = vrcp.pop 32.0
        %v1279 = vmul.f32 32.0, %v1278
        %v1280 = vsub.f32 1.0, %v1279
        %v1281 = vmul.f32 %v1278, %v1280
        %v1282 = vadd.f32 %v1278, %v1281
        %vm1283 = vweird.f32 %v1278
        %v1284 = vsel %vm1283, %v1278, %v1282
        %v1285 = vmul.f32 %v1277, %v1284
        %v1286 = vsub.f32 %v1272, %v1285
        %v1287 = vmul.f32 %v1286, %v1286
        %v1288 = vsel %vm1077, %v1287, 0.0
        %1289 = vadd.xlane.f32.xlu0 %v1288
        %v1290 = vpop.xlane.xlu0 %1289
        %v1291 = vmul.f32 %v1290, %v1284
        %v1292 = vadd.f32 %v1291, 1e-12
        %v1293 = vrsqrt.pop %v1292
        %v1294 = vmul.f32 %v1293, %v1292
        %v1295 = vmul.f32 %v1294, %v1293
        %v1296 = vmul.f32 0.5, %v1295
        %v1297 = vsub.f32 1.5, %v1296
        %v1298 = vmul.f32 %v1293, %v1297
        %vm1299 = vweird.f32 %v1292
        %vm1300 = vweird.f32 %v1293
        %vm1301 = vmor %vm1299, %vm1300
        %v1302 = vsel %vm1301, %v1293, %v1298
        %v1303 = vmul.f32 %v1286, %v1302
        %v1305 = vperm.slane %v1273, 0
        %v1307 = vmul.f32 %v1303, %v1305
        %v1309 = vperm.slane %v1274, 0
        %v1311 = vadd.f32 %v1307, %v1309
        %v1312 = vpack.c.bf16 %v1311, %v1311
        %v1313 = vld [vmem:[%s990] sm:$0xf]
        %v1314 = vld [vmem:[%s990 + $0x4] sm:$0xf]
        %v1315 = vld [vmem:[%s990 + $0x8] sm:$0xf]
        %v1316 = vld [vmem:[%s990 + $0xc] sm:$0xf]
        %v1317 = vld [vmem:[%s993] sm:$0x1]
        %v1319 = vperm.slane %v1317, 0
        %v1325 = vunpack.c.l.b16 %v1313
        %v1326 = vunpack.c.l.b16 %v1314
        %v1327 = vunpack.c.l.b16 %v1315
        %v1328 = vunpack.c.l.b16 %v1316
        %v1329 = vpack.c.b16 %v1326, %v1325
        %v1330 = vpack.c.b16 %v1328, %v1327
        %v1334 = vsel %vm1077, %v1312, 0
        %1336 = vmatpush.bf16.msra.mxu0 0
        %1337 = vmatpush.bf16.msra.mxu0 0
        %1338 = vmatpush.bf16.msra.mxu0 0
        %1339 = vmatpush.bf16.msra.mxu0 0
        %1340 = vmatpush.bf16.msra.mxu0 0
        %1341 = vmatpush.bf16.msra.mxu0 0
        %1342 = vmatpush.bf16.msra.mxu0 %v1330
        %1343 = vmatpush.bf16.msra.mxu0 %v1329
        %1344 = vmatmul.bf16.gmra.mxu0 %v1334
        %v1345 = vpop.f32.mrf.mxu0
        %v1346 = vadd.f32 %v1319, %v1345
        %v1347 = vpop.f32.mrf.mxu0
        %1348 = vdwg.mxu0
        %v1349 = vmul.f32 %v1346, %v1346
        %v1350 = vmul.f32 %v1346, %v1349
        %v1351 = vmul.f32 %v1350, 0.044715
        %v1352 = vadd.f32 %v1346, %v1351
        %v1353 = vmul.f32 %v1352, 0.7978846
        %v1354 = vtanh.pop %v1353
        %v1355 = vadd.f32 %v1354, 1.0
        %v1356 = vmul.f32 %v1355, 0.5
        %v1357 = vmul.f32 %v1346, %v1356
        %v1358 = vpack.c.bf16 %v1357, %v1357
        %v1359 = vld [vmem:[%s998] sm:$0xf]
        %v1360 = vld [vmem:[%s998 + $0x4] sm:$0xf]
        %v1361 = vld [vmem:[%s998 + $0x8] sm:$0xf]
        %v1362 = vld [vmem:[%s998 + $0xc] sm:$0xf]
        %v1363 = vld [vmem:[%s998 + $0x10] sm:$0xf]
        %v1364 = vld [vmem:[%s998 + $0x14] sm:$0xf]
        %v1365 = vld [vmem:[%s998 + $0x18] sm:$0xf]
        %v1366 = vld [vmem:[%s998 + $0x1c] sm:$0xf]
        %v1367 = vld [vmem:[%s1001] sm:$0x1]
        %v1369 = vperm.slane %v1367, 0
        %v1379 = vunpack.c.l.b16 %v1359
        %v1380 = vunpack.c.l.b16 %v1360
        %v1381 = vunpack.c.l.b16 %v1361
        %v1382 = vunpack.c.l.b16 %v1362
        %v1383 = vunpack.c.l.b16 %v1363
        %v1384 = vunpack.c.l.b16 %v1364
        %v1385 = vunpack.c.l.b16 %v1365
        %v1386 = vunpack.c.l.b16 %v1366
        %v1387 = vpack.c.b16 %v1380, %v1379
        %v1388 = vpack.c.b16 %v1382, %v1381
        %v1389 = vpack.c.b16 %v1384, %v1383
        %v1390 = vpack.c.b16 %v1386, %v1385
        %vm1395 = vcmask 523264
        %v1397 = vsel %vm1395, %v1358, 0
        %1399 = vmatpush.bf16.msra.mxu0 0
        %1400 = vmatpush.bf16.msra.mxu0 0
        %1401 = vmatpush.bf16.msra.mxu0 0
        %1402 = vmatpush.bf16.msra.mxu0 0
        %1403 = vmatpush.bf16.msra.mxu0 %v1390
        %1404 = vmatpush.bf16.msra.mxu0 %v1389
        %1405 = vmatpush.bf16.msra.mxu0 %v1388
        %1406 = vmatpush.bf16.msra.mxu0 %v1387
        %1407 = vmatmul.bf16.gmra.mxu0 %v1397
        %v1408 = vpop.f32.mrf.mxu0
        %v1409 = vadd.f32 %v1369, %v1408
        %v1410 = vpop.f32.mrf.mxu0
        %1411 = vdwg.mxu0
        %v1412 = vadd.f32 %v1311, %v1409
        %v1413 = vld [vmem:[%s1004] sm:$0x1]
        %v1414 = vld [vmem:[%s1007] sm:$0x1]
        %v1415 = vsel %vm1077, %v1412, 0.0
        %1416 = vadd.xlane.f32.xlu0 %v1415
        %v1417 = vpop.xlane.xlu0 %1416
        %v1418 = vmul.f32 %v1417, %v1284
        %v1419 = vsub.f32 %v1412, %v1418
        %v1420 = vmul.f32 %v1419, %v1419
        %v1421 = vsel %vm1077, %v1420, 0.0
        %1422 = vadd.xlane.f32.xlu0 %v1421
        %v1423 = vpop.xlane.xlu0 %1422
        %v1424 = vmul.f32 %v1423, %v1284
        %v1425 = vadd.f32 %v1424, 1e-12
        %v1426 = vrsqrt.pop %v1425
        %v1427 = vmul.f32 %v1426, %v1425
        %v1428 = vmul.f32 %v1427, %v1426
        %v1429 = vmul.f32 0.5, %v1428
        %v1430 = vsub.f32 1.5, %v1429
        %v1431 = vmul.f32 %v1426, %v1430
        %vm1432 = vweird.f32 %v1425
        %vm1433 = vweird.f32 %v1426
        %vm1434 = vmor %vm1432, %vm1433
        %v1435 = vsel %vm1434, %v1426, %v1431
        %v1436 = vmul.f32 %v1419, %v1435
        %v1438 = vperm.slane %v1413, 0
        %v1440 = vmul.f32 %v1436, %v1438
        %v1442 = vperm.slane %v1414, 0
        %v1444 = vadd.f32 %v1440, %v1442
        %1445 = vst.msk [vmem:[#allocation2] sm:$0xff] %vm1077, %v1444
        %p1446 = scmp.eq.s32.totalorder %s44, 1
        // Predicated region
        $region125: #{_lambda_.1} parent=119 // pred_check
          %p1447 = pneg %p1446
        $region126: #{_lambda_.1} parent=119 // pred_check_branch
          %1449 = sbr.rel (%p1447) target = $region128
        $region127: #{_lambda_.1} parent=119 // pred_region
          %v1450 = vpack.c.bf16 %v1444, %v1444
          %v1451 = vld [vmem:[%s18] sm:$0xf]
          %v1452 = vld [vmem:[%s18 + $0x4] sm:$0xf]
          %v1453 = vld [vmem:[%s18 + $0x8] sm:$0xf]
          %v1454 = vld [vmem:[%s18 + $0xc] sm:$0xf]
          %v1455 = vld [vmem:[%s19] sm:$0x1]
          %v1460 = vunpack.c.l.b16 %v1451
          %v1461 = vunpack.c.l.b16 %v1452
          %v1462 = vunpack.c.l.b16 %v1453
          %v1463 = vunpack.c.l.b16 %v1454
          %v1464 = vpack.c.b16 %v1461, %v1460
          %v1465 = vpack.c.b16 %v1463, %v1462
          %v1469 = vsel %vm1077, %v1450, 0
          %1471 = vmatpush.bf16.msra.mxu0 0
          %1472 = vmatpush.bf16.msra.mxu0 0
          %1473 = vmatpush.bf16.msra.mxu0 0
          %1474 = vmatpush.bf16.msra.mxu0 0
          %1475 = vmatpush.bf16.msra.mxu0 0
          %1476 = vmatpush.bf16.msra.mxu0 0
          %1477 = vmatpush.bf16.msra.mxu0 %v1465
          %1478 = vmatpush.bf16.msra.mxu0 %v1464
          %1479 = vmatmul.bf16.gmra.mxu0 %v1469
          %v1480 = vpop.f32.mrf.mxu0
          %v1481 = vadd.f32 %v1455, %v1480
          %v1482 = vpop.f32.mrf.mxu0
          %1483 = vdwg.mxu0
          %v1484 = vtanh.pop %v1481
          %v1485 = vpack.c.bf16 %v1484, %v1484
          %v1486 = vld [vmem:[%s20] sm:$0xff]
          %v1487 = vld [vmem:[%s20 + $0x8] sm:$0xff]
          %v1488 = vld [vmem:[%s20 + $0x10] sm:$0xff]
          %v1489 = vld [vmem:[%s20 + $0x18] sm:$0xff]
          %v1490 = vld [vmem:[%s959] sm:$0x1]
          %v1491 = vpack.c.bf16 %v1490, %v1490
          %v1492 = vld [vmem:[%s21] sm:$0xff]
          %v1494 = vunpack.c.l.b16 %v1492
          %v1495 = vunpack.c.h.b16 %v1492
          %v1496 = vpack.c.b16 %v1494, %v1494
          %v1497 = vpack.c.b16 %v1495, %v1495
          %v1499 = vsel %vm1124, %v1491, 0
          %v1502 = vsel %vm1142, %v1496, 0
          %v1505 = vsel %vm1142, %v1497, 0
          %1507 = vmatpush.bf16.msra.mxu0 0
          %1508 = vmatpush.bf16.msra.mxu0 0
          %1509 = vmatpush.bf16.msra.mxu0 0
          %1510 = vmatpush.bf16.msra.mxu0 0
          %1511 = vmatpush.bf16.msra.mxu0 0
          %1512 = vmatpush.bf16.msra.mxu0 0
          %1513 = vmatpush.bf16.msra.mxu0 0
          %1514 = vmatpush.bf16.msra.mxu0 %v1502
          %1515 = vmatmul.bf16.gmra.mxu0 %v1499
          %v1516 = vpop.f32.mrf.mxu0
          %v1517 = vadd.f32 0.0, %v1516
          %v1518 = vpop.f32.mrf.mxu0
          %1519 = vdwg.mxu0
          %1520 = vmatpush.bf16.msra.mxu0 0
          %1521 = vmatpush.bf16.msra.mxu0 0
          %1522 = vmatpush.bf16.msra.mxu0 0
          %1523 = vmatpush.bf16.msra.mxu0 0
          %1524 = vmatpush.bf16.msra.mxu0 0
          %1525 = vmatpush.bf16.msra.mxu0 0
          %1526 = vmatpush.bf16.msra.mxu0 0
          %1527 = vmatpush.bf16.msra.mxu0 %v1505
          %1528 = vmatmul.bf16.gmra.mxu0 %v1499
          %v1529 = vpop.f32.mrf.mxu0
          %v1530 = vadd.f32 0.0, %v1529
          %v1531 = vpop.f32.mrf.mxu0
          %1532 = vdwg.mxu0
          %v1537 = vunpack.c.l.b16 %v1486
          %v1538 = vunpack.c.h.b16 %v1486
          %v1539 = vunpack.c.l.b16 %v1487
          %v1540 = vunpack.c.h.b16 %v1487
          %v1541 = vunpack.c.l.b16 %v1488
          %v1542 = vunpack.c.h.b16 %v1488
          %v1543 = vunpack.c.l.b16 %v1489
          %v1544 = vunpack.c.h.b16 %v1489
          %v1545 = vpack.c.b16 %v1539, %v1537
          %v1546 = vpack.c.b16 %v1540, %v1538
          %v1547 = vpack.c.b16 %v1543, %v1541
          %v1548 = vpack.c.b16 %v1544, %v1542
          %v1554 = vsel %vm1077, %v1485, 0
          %1556 = vmatpush.bf16.msra.mxu0 0
          %1557 = vmatpush.bf16.msra.mxu0 0
          %1558 = vmatpush.bf16.msra.mxu0 0
          %1559 = vmatpush.bf16.msra.mxu0 0
          %1560 = vmatpush.bf16.msra.mxu0 0
          %1561 = vmatpush.bf16.msra.mxu0 0
          %1562 = vmatpush.bf16.msra.mxu0 %v1547
          %1563 = vmatpush.bf16.msra.mxu0 %v1545
          %1564 = vmatmul.bf16.gmra.mxu0 %v1554
          %v1565 = vpop.f32.mrf.mxu0
          %v1566 = vadd.f32 %v1517, %v1565
          %v1567 = vpop.f32.mrf.mxu0
          %1568 = vdwg.mxu0
          %1569 = vmatpush.bf16.msra.mxu0 0
          %1570 = vmatpush.bf16.msra.mxu0 0
          %1571 = vmatpush.bf16.msra.mxu0 0
          %1572 = vmatpush.bf16.msra.mxu0 0
          %1573 = vmatpush.bf16.msra.mxu0 0
          %1574 = vmatpush.bf16.msra.mxu0 0
          %1575 = vmatpush.bf16.msra.mxu0 %v1548
          %1576 = vmatpush.bf16.msra.mxu0 %v1546
          %1577 = vmatmul.bf16.gmra.mxu0 %v1554
          %v1578 = vpop.f32.mrf.mxu0
          %v1579 = vadd.f32 %v1530, %v1578
          %v1580 = vpop.f32.mrf.mxu0
          %1581 = vdwg.mxu0
          %v1582 = vld [vmem:[%s22] sm:$0x3]
          %v1584 = vperm.slane %v1582, 0
          %v1585 = vperm.slane %v1582, 1
          %v1588 = vadd.f32 %v1566, %v1584
          %v1589 = vadd.f32 %v1579, %v1585
          %v1590 = vmax.f32 %v1588, 0.0
          %v1591 = vmax.f32 %v1589, 0.0
          %v1592 = vld [vmem:[%s963] sm:$0x3]
          %v1594 = vperm.slane %v1592, 0
          %v1595 = vperm.slane %v1592, 1
          %v1598 = vmul.f32 %v1590, %v1594
          %v1599 = vmul.f32 %v1591, %v1595
          %v1600 = vpack.c.bf16 %v1598, %v1598
          %v1601 = vpack.c.bf16 %v1599, %v1599
          %v1602 = vld [vmem:[%s23] sm:$0xf]
          %v1603 = vld [vmem:[%s23 + $0x4] sm:$0xf]
          %v1604 = vld [vmem:[%s23 + $0x8] sm:$0xf]
          %v1605 = vld [vmem:[%s23 + $0xc] sm:$0xf]
          %v1606 = vld [vmem:[%s23 + $0x10] sm:$0xf]
          %v1607 = vld [vmem:[%s23 + $0x14] sm:$0xf]
          %v1608 = vld [vmem:[%s23 + $0x18] sm:$0xf]
          %v1609 = vld [vmem:[%s23 + $0x1c] sm:$0xf]
          %v1610 = vld [vmem:[%s23 + $0x20] sm:$0xf]
          %v1611 = vld [vmem:[%s23 + $0x24] sm:$0xf]
          %v1612 = vld [vmem:[%s23 + $0x28] sm:$0xf]
          %v1613 = vld [vmem:[%s23 + $0x2c] sm:$0xf]
          %v1614 = vld [vmem:[%s23 + $0x30] sm:$0xf]
          %v1615 = vld [vmem:[%s23 + $0x34] sm:$0xf]
          %v1616 = vld [vmem:[%s23 + $0x38] sm:$0xf]
          %v1617 = vld [vmem:[%s23 + $0x3c] sm:$0xf]
          %v1618 = vld [vmem:[%s23 + $0x40] sm:$0xf]
          %v1619 = vld [vmem:[%s23 + $0x44] sm:$0xf]
          %v1620 = vld [vmem:[%s23 + $0x48] sm:$0xf]
          %v1621 = vld [vmem:[%s23 + $0x4c] sm:$0xf]
          %v1622 = vld [vmem:[%s23 + $0x50] sm:$0xf]
          %v1623 = vld [vmem:[%s23 + $0x54] sm:$0xf]
          %v1624 = vld [vmem:[%s23 + $0x58] sm:$0xf]
          %v1625 = vld [vmem:[%s23 + $0x5c] sm:$0xf]
          %v1626 = vld [vmem:[%s23 + $0x60] sm:$0xf]
          %v1627 = vld [vmem:[%s23 + $0x64] sm:$0xf]
          %v1628 = vld [vmem:[%s23 + $0x68] sm:$0xf]
          %v1629 = vld [vmem:[%s23 + $0x6c] sm:$0xf]
          %v1630 = vld [vmem:[%s23 + $0x70] sm:$0xf]
          %v1631 = vld [vmem:[%s23 + $0x74] sm:$0xf]
          %v1632 = vld [vmem:[%s23 + $0x78] sm:$0xf]
          %v1633 = vld [vmem:[%s23 + $0x7c] sm:$0xf]
          %v1634 = vld [vmem:[%s24] sm:$0x1]
          %v1667 = vunpack.c.l.b16 %v1602
          %v1668 = vunpack.c.l.b16 %v1603
          %v1669 = vunpack.c.l.b16 %v1604
          %v1670 = vunpack.c.l.b16 %v1605
          %v1671 = vunpack.c.l.b16 %v1606
          %v1672 = vunpack.c.l.b16 %v1607
          %v1673 = vunpack.c.l.b16 %v1608
          %v1674 = vunpack.c.l.b16 %v1609
          %v1675 = vunpack.c.l.b16 %v1610
          %v1676 = vunpack.c.l.b16 %v1611
          %v1677 = vunpack.c.l.b16 %v1612
          %v1678 = vunpack.c.l.b16 %v1613
          %v1679 = vunpack.c.l.b16 %v1614
          %v1680 = vunpack.c.l.b16 %v1615
          %v1681 = vunpack.c.l.b16 %v1616
          %v1682 = vunpack.c.l.b16 %v1617
          %v1683 = vunpack.c.l.b16 %v1618
          %v1684 = vunpack.c.l.b16 %v1619
          %v1685 = vunpack.c.l.b16 %v1620
          %v1686 = vunpack.c.l.b16 %v1621
          %v1687 = vunpack.c.l.b16 %v1622
          %v1688 = vunpack.c.l.b16 %v1623
          %v1689 = vunpack.c.l.b16 %v1624
          %v1690 = vunpack.c.l.b16 %v1625
          %v1691 = vunpack.c.l.b16 %v1626
          %v1692 = vunpack.c.l.b16 %v1627
          %v1693 = vunpack.c.l.b16 %v1628
          %v1694 = vunpack.c.l.b16 %v1629
          %v1695 = vunpack.c.l.b16 %v1630
          %v1696 = vunpack.c.l.b16 %v1631
          %v1697 = vunpack.c.l.b16 %v1632
          %v1698 = vunpack.c.l.b16 %v1633
          %v1699 = vpack.c.b16 %v1668, %v1667
          %v1700 = vpack.c.b16 %v1670, %v1669
          %v1701 = vpack.c.b16 %v1672, %v1671
          %v1702 = vpack.c.b16 %v1674, %v1673
          %v1703 = vpack.c.b16 %v1676, %v1675
          %v1704 = vpack.c.b16 %v1678, %v1677
          %v1705 = vpack.c.b16 %v1680, %v1679
          %v1706 = vpack.c.b16 %v1682, %v1681
          %v1707 = vpack.c.b16 %v1684, %v1683
          %v1708 = vpack.c.b16 %v1686, %v1685
          %v1709 = vpack.c.b16 %v1688, %v1687
          %v1710 = vpack.c.b16 %v1690, %v1689
          %v1711 = vpack.c.b16 %v1692, %v1691
          %v1712 = vpack.c.b16 %v1694, %v1693
          %v1713 = vpack.c.b16 %v1696, %v1695
          %v1714 = vpack.c.b16 %v1698, %v1697
          %1731 = vmatpush.bf16.msra.mxu0 %v1706
          %1732 = vmatpush.bf16.msra.mxu0 %v1705
          %1733 = vmatpush.bf16.msra.mxu0 %v1704
          %1734 = vmatpush.bf16.msra.mxu0 %v1703
          %1735 = vmatpush.bf16.msra.mxu0 %v1702
          %1736 = vmatpush.bf16.msra.mxu0 %v1701
          %1737 = vmatpush.bf16.msra.mxu0 %v1700
          %1738 = vmatpush.bf16.msra.mxu0 %v1699
          %1739 = vmatmul.bf16.gmra.mxu0 %v1600
          %v1740 = vpop.f32.mrf.mxu0
          %v1741 = vadd.f32 %v1634, %v1740
          %v1742 = vpop.f32.mrf.mxu0
          %1743 = vdwg.mxu0
          %1744 = vmatpush.bf16.msra.mxu0 %v1714
          %1745 = vmatpush.bf16.msra.mxu0 %v1713
          %1746 = vmatpush.bf16.msra.mxu0 %v1712
          %1747 = vmatpush.bf16.msra.mxu0 %v1711
          %1748 = vmatpush.bf16.msra.mxu0 %v1710
          %1749 = vmatpush.bf16.msra.mxu0 %v1709
          %1750 = vmatpush.bf16.msra.mxu0 %v1708
          %1751 = vmatpush.bf16.msra.mxu0 %v1707
          %1752 = vmatmul.bf16.gmra.mxu0 %v1601
          %v1753 = vpop.f32.mrf.mxu0
          %v1754 = vadd.f32 %v1741, %v1753
          %v1755 = vpop.f32.mrf.mxu0
          %1756 = vdwg.mxu0
          %vm1757 = vcmask 24576
          %1758 = vst.msk [vmem:[%s949] sm:$0x1] %vm1757, %v1754
        $region128: #{_lambda_.1} parent=119 // pred_fallthru
          _
        %s1759 = sand.u32 %s664, 1
        %s1760 = scalar_lea.sflag [#allocation4], %s1759
        %s1761 = sand.u32 %s664, 1
        %s1762 = scalar_lea.vmem [#allocation3], %s1761
        // Predicated region
        $region129: #{_lambda_.1} parent=119 // pred_check
          %p1763 = pneg %p674
        $region130: #{_lambda_.1} parent=119 // pred_check_branch
          %1765 = sbr.rel (%p1763) target = $region132
        $region131: #{_lambda_.1} parent=119 // pred_region
          %1767 = vsyncadd %s1760, 0
          %s1768 = scalar_lea.hbm %s25, %s43
          %s1770 = sshll.u32 %s1762, 4
          %s1771 = int_to_ptr.vmem [resolvable:$true] %s1770
          %s1772 = sshll.u32 %s1768, 4
          %s1773 = int_to_ptr.hbm [resolvable:$true] %s1772
          %1775 = dma.vmem_to_hbm [thread:$0]  %s1771, 16, %s1773, %s1760
        $region132: #{_lambda_.1} parent=119 // pred_fallthru
          _
      $region120: #{_lambda_.1} parent=5 // pred_fallthru
        _
      %p1776 = scmp.le.s32.totalorder 2, %s34
      // Predicated region
      $region133: #{_lambda_.1} parent=5 // pred_check
        %p1777 = pneg %p1776
      $region134: #{_lambda_.1} parent=5 // pred_check_branch
        %1779 = sbr.rel (%p1777) target = $region136
      $region135: #{_lambda_.1} parent=5 // pred_region
        %s1780 = ssub.s32 %s34, 2
        // Predicated region
        $region137: #{_lambda_.1} parent=135 // pred_check
          %p1781 = pneg %p680
        $region138: #{_lambda_.1} parent=135 // pred_check_branch
          %1783 = sbr.rel (%p1781) target = $region140
        $region139: #{_lambda_.1} parent=135 // pred_region
          %s1784 = sand.u32 %s665, 1
          %s1785 = scalar_lea.sflag [#allocation4], %s1784
          %s1786 = sand.u32 %s665, 1
          %s1787 = scalar_lea.vmem [#allocation3], %s1786
          %1789 = dma.done %s1785, 16
        $region140: #{_lambda_.1} parent=135 // pred_fallthru
          _
      $region136: #{_lambda_.1} parent=5 // pred_fallthru
        _
    $region6: #{_lambda_.1} parent=1 // loop_footer
      %s38 = sadd.s32 1, %s34
    $region7: #{_lambda_.1} parent=1 // loop_footer_branch
      %33 = sbr.rel target = $region3
    $region8: #{_lambda_.1} parent=1 // loop_exit
      _
    %1790 = vsyncpa [#allocation4], 1
    %s1791 = scalar_lea.sflag [#allocation4], 1
    %1792 = vsyncpa %s1791, 1

</llo_original>
